<compile_context>
chip_gen: v7x
topology: tpu7x:2x2x1
jax: 0.10.0
libtpu: 0.0.40
codegen_flags: <defaults>
</compile_context>

<pallas_src>
import jax
import jax.numpy as jnp
from jax.experimental import pallas as pl
from jax.experimental.pallas import tpu as pltpu

LANE = 128


def _round_up(n, m):
    return ((n + m - 1) // m) * m


def _detector_kernel(x_ref,
                     w1, b1,                          # fused first layer [F, 128+512]
                     rw2, rb2, rw3, rb3, rw4, rb4,    # regressor (padded to 128 lanes)
                     cw2, cb2, cw3, cb3,              # classifier
                     bbox_ref, logits_ref):
    x = x_ref[...].astype(jnp.bfloat16)

    def linear(h_bf16, w_ref, b_ref):
        # bf16 x bf16 matmul on the MXU, f32 accumulation, f32 bias add.
        return jnp.dot(h_bf16, w_ref[...],
                       preferred_element_type=jnp.float32) + b_ref[...]

    def linear_relu(h_bf16, w_ref, b_ref):
        return jnp.maximum(linear(h_bf16, w_ref, b_ref), 0.0).astype(jnp.bfloat16)

    # --- shared first layer: regressor-128 | classifier-512 fused into one matmul ---
    h0 = linear_relu(x, w1, b1)          # (TM, 640) bf16
    h_reg = h0[:, :128]                  # lane-aligned slices
    h_cls = h0[:, 128:]

    # --- regressor head: 128 -> 128(=64 padded) -> 128(=32 padded) -> 128(=4 padded), Sigmoid
    h = linear_relu(h_reg, rw2, rb2)
    h = linear_relu(h, rw3, rb3)
    bb = linear(h, rw4, rb4)             # (TM, 128) f32, only first 4 lanes meaningful
    bbox_ref[...] = pl.reciprocal(1.0 + jnp.exp(-bb), approx=True).astype(bbox_ref.dtype)

    # --- classifier head: 512 -> 512 -> NC_pad (Dropout = identity in eval) ---
    c = linear_relu(h_cls, cw2, cb2)
    logits_ref[...] = linear(c, cw3, cb3).astype(logits_ref.dtype)


def prepare_params(params, num_classes):
    """Fuse / pad / bf16-cast the f32 [in, out] params for the kernel."""
    def pad2(w, rows, cols):
        r, c = w.shape
        return jnp.pad(w, ((0, rows - r), (0, cols - c)))

    nc_pad = _round_up(max(num_classes, 1), LANE)

    w1 = jnp.concatenate([params["rw1"], params["cw1"]], axis=1)   # [F, 640]
    b1 = jnp.concatenate([params["rb1"], params["cb1"]], axis=1)   # [1, 640]

    return {
        "w1":  w1.astype(jnp.bfloat16),
        "b1":  b1.astype(jnp.float32),
        "rw2": pad2(params["rw2"], 128, 128).astype(jnp.bfloat16),
        "rb2": pad2(params["rb2"], 1, 128).astype(jnp.float32),
        "rw3": pad2(params["rw3"], 128, 128).astype(jnp.bfloat16),
        "rb3": pad2(params["rb3"], 1, 128).astype(jnp.float32),
        "rw4": pad2(params["rw4"], 128, 128).astype(jnp.bfloat16),
        "rb4": pad2(params["rb4"], 1, 128).astype(jnp.float32),
        "cw2": params["cw2"].astype(jnp.bfloat16),
        "cb2": params["cb2"].astype(jnp.float32),
        "cw3": pad2(params["cw3"], params["cw3"].shape[0], nc_pad).astype(jnp.bfloat16),
        "cb3": pad2(params["cb3"], 1, nc_pad).astype(jnp.float32),
    }


def object_detector_forward(x, packed, num_classes):
    """x: [B, F] float32. packed: output of prepare_params. Returns (bboxes, logits)."""
    B, F = x.shape
    nc_pad = packed["cw3"].shape[1]

    # Batch tile: 256 rows matches the 256-wide MXU on v6e/v7x; small batches use
    # one full-batch tile (rounded up to the 8-row sublane granule).
    TM = 256 if B >= 256 else _round_up(B, 8)
    B_pad = _round_up(B, TM)
    if B_pad != B:
        x = jnp.pad(x, ((0, B_pad - B), (0, 0)))
    num_tiles = B_pad // TM

    order = ("w1", "b1", "rw2", "rb2", "rw3", "rb3", "rw4", "rb4",
             "cw2", "cb2", "cw3", "cb3")
    weight_args = tuple(packed[name] for name in order)

    in_specs = [pl.BlockSpec((TM, F), lambda i: (i, 0))]           # activation tile
    in_specs += [pl.BlockSpec(w.shape, lambda i: (0, 0))           # resident weights
                 for w in weight_args]

    out_shapes = (
        jax.ShapeDtypeStruct((B_pad, LANE), jnp.float32),          # bboxes (padded lanes)
        jax.ShapeDtypeStruct((B_pad, nc_pad), jnp.float32),        # logits (padded lanes)
    )
    out_specs = (
        pl.BlockSpec((TM, LANE), lambda i: (i, 0)),
        pl.BlockSpec((TM, nc_pad), lambda i: (i, 0)),
    )

    bbox_pad, logits_pad = pl.pallas_call(
        _detector_kernel,
        out_shape=out_shapes,
        grid=(num_tiles,),
        in_specs=in_specs,
        out_specs=out_specs,
        compiler_params=pltpu.CompilerParams(
            dimension_semantics=("parallel",)),
    )(x, *weight_args)

    return bbox_pad[:B, :4], logits_pad[:B, :num_classes]


def init_params(key, in_features, num_classes):
    """Deterministic synthetic parameters (f32). Weights stored as [in, out]."""
    dims_reg = [(in_features, 128), (128, 64), (64, 32), (32, 4)]
    dims_cls = [(in_features, 512), (512, 512), (512, num_classes)]
    params = {}
    names = (["rw1", "rw2", "rw3", "rw4"], ["rb1", "rb2", "rb3", "rb4"],
             ["cw1", "cw2", "cw3"], ["cb1", "cb2", "cb3"])
    keys = jax.random.split(key, len(dims_reg) + len(dims_cls))
    for i, (din, dout) in enumerate(dims_reg):
        scale = 1.0 / jnp.sqrt(jnp.float32(din))
        params[names[0][i]] = jax.random.normal(keys[i], (din, dout), jnp.float32) * scale
        params[names[1][i]] = jnp.full((1, dout), 0.01, jnp.float32)
    for i, (din, dout) in enumerate(dims_cls):
        scale = 1.0 / jnp.sqrt(jnp.float32(din))
        k = keys[len(dims_reg) + i]
        params[names[2][i]] = jax.random.normal(k, (din, dout), jnp.float32) * scale
        params[names[3][i]] = jnp.full((1, dout), 0.01, jnp.float32)
    return params


def reference_forward(x, params):
    """Pure-JAX f32 reference using the same bf16-quantized weights as the kernel."""
    q = lambda w: w.astype(jnp.bfloat16).astype(jnp.float32)

    def lin(h, w, b):
        return h @ q(w) + b

    h = jax.nn.relu(lin(x, params["rw1"], params["rb1"]))
    h = jax.nn.relu(lin(h, params["rw2"], params["rb2"]))
    h = jax.nn.relu(lin(h, params["rw3"], params["rb3"]))
    bboxes = jax.nn.sigmoid(lin(h, params["rw4"], params["rb4"]))
    c = jax.nn.relu(lin(x, params["cw1"], params["cb1"]))
    c = jax.nn.relu(lin(c, params["cw2"], params["cb2"]))
    logits = lin(c, params["cw3"], params["cb3"])
    return bboxes, logits


if __name__ == "__main__":
    key = jax.random.PRNGKey(0)
    k_x, k_p = jax.random.split(key)

    batch = 8
    in_features = 32   # baseModel.fc.in_features
    num_classes = 16

    x = jax.random.normal(k_x, (batch, in_features), jnp.float32)
    params = init_params(k_p, in_features, num_classes)
    packed = prepare_params(params, num_classes)

    bboxes, logits = object_detector_forward(x, packed, num_classes)
    jax.block_until_ready((bboxes, logits))

    ref_bb, ref_lg = reference_forward(x, params)
    assert bboxes.shape == (batch, 4)
    assert logits.shape == (batch, num_classes)
    # bf16 weights + bf16 activation casts in the kernel vs f32 reference math.
    assert jnp.allclose(bboxes, ref_bb, atol=2e-2, rtol=2e-2), \
        float(jnp.max(jnp.abs(bboxes - ref_bb)))
    assert jnp.allclose(logits, ref_lg, atol=5e-2, rtol=5e-2), \
        float(jnp.max(jnp.abs(logits - ref_lg)))

    print("KERNEL_OK")
</pallas_src>

<mosaic_0001>
module attributes {stable_mosaic.version = 11 : i64} {
  func.func @_detector_kernel(%arg0: i32, %arg1: memref<8x32xf32, #tpu.memory_space<vmem>>, %arg2: memref<32x640xbf16, #tpu.memory_space<vmem>>, %arg3: memref<1x640xf32, #tpu.memory_space<vmem>>, %arg4: memref<128x128xbf16, #tpu.memory_space<vmem>>, %arg5: memref<1x128xf32, #tpu.memory_space<vmem>>, %arg6: memref<128x128xbf16, #tpu.memory_space<vmem>>, %arg7: memref<1x128xf32, #tpu.memory_space<vmem>>, %arg8: memref<128x128xbf16, #tpu.memory_space<vmem>>, %arg9: memref<1x128xf32, #tpu.memory_space<vmem>>, %arg10: memref<512x512xbf16, #tpu.memory_space<vmem>>, %arg11: memref<1x512xf32, #tpu.memory_space<vmem>>, %arg12: memref<512x128xbf16, #tpu.memory_space<vmem>>, %arg13: memref<1x128xf32, #tpu.memory_space<vmem>>, %arg14: memref<8x128xf32, #tpu.memory_space<vmem>>, %arg15: memref<8x128xf32, #tpu.memory_space<vmem>>) attributes {dimension_semantics = [#tpu.dimension_semantics<parallel>], iteration_bounds = array<i64: 1>, scalar_prefetch = 0 : i64, scratch_operands = 0 : i64, tpu.core_type = #tpu.core_type<tc>, window_params = [{transform_indices = @transform_0, window_bounds = array<i64: 8, 32>}, {pipeline_mode = #tpu.pipeline_mode<synchronous>, transform_indices = @transform_1, window_bounds = array<i64: 32, 640>}, {pipeline_mode = #tpu.pipeline_mode<synchronous>, transform_indices = @transform_2, window_bounds = array<i64: 1, 640>}, {pipeline_mode = #tpu.pipeline_mode<synchronous>, transform_indices = @transform_3, window_bounds = array<i64: 128, 128>}, {pipeline_mode = #tpu.pipeline_mode<synchronous>, transform_indices = @transform_4, window_bounds = array<i64: 1, 128>}, {pipeline_mode = #tpu.pipeline_mode<synchronous>, transform_indices = @transform_5, window_bounds = array<i64: 128, 128>}, {pipeline_mode = #tpu.pipeline_mode<synchronous>, transform_indices = @transform_6, window_bounds = array<i64: 1, 128>}, {pipeline_mode = #tpu.pipeline_mode<synchronous>, transform_indices = @transform_7, window_bounds = array<i64: 128, 128>}, {pipeline_mode = #tpu.pipeline_mode<synchronous>, transform_indices = @transform_8, window_bounds = array<i64: 1, 128>}, {pipeline_mode = #tpu.pipeline_mode<synchronous>, transform_indices = @transform_9, window_bounds = array<i64: 512, 512>}, {pipeline_mode = #tpu.pipeline_mode<synchronous>, transform_indices = @transform_10, window_bounds = array<i64: 1, 512>}, {pipeline_mode = #tpu.pipeline_mode<synchronous>, transform_indices = @transform_11, window_bounds = array<i64: 512, 128>}, {pipeline_mode = #tpu.pipeline_mode<synchronous>, transform_indices = @transform_12, window_bounds = array<i64: 1, 128>}, {transform_indices = @transform_13, window_bounds = array<i64: 8, 128>}, {transform_indices = @transform_14, window_bounds = array<i64: 8, 128>}]} {
    %c0 = arith.constant 0 : index
    %c0_0 = arith.constant 0 : index
    %0 = vector.load %arg1[%c0, %c0_0] : memref<8x32xf32, #tpu.memory_space<vmem>>, vector<8x32xf32>
    %1 = arith.truncf %0 : vector<8x32xf32> to vector<8x32xbf16>
    %c0_1 = arith.constant 0 : index
    %c0_2 = arith.constant 0 : index
    %2 = vector.load %arg2[%c0_1, %c0_2] : memref<32x640xbf16, #tpu.memory_space<vmem>>, vector<32x640xbf16>
    %cst = arith.constant dense<0.000000e+00> : vector<8x640xf32>
    %3 = tpu.matmul %1, %2, %cst {dimension_numbers = #tpu.dot_dimension_numbers<[1], [0], [0], [1], [0, 0, 1, 1], [], []>} : vector<8x32xbf16>, vector<32x640xbf16>, vector<8x640xf32> -> vector<8x640xf32>
    %c0_3 = arith.constant 0 : index
    %c0_4 = arith.constant 0 : index
    %4 = vector.load %arg3[%c0_3, %c0_4] : memref<1x640xf32, #tpu.memory_space<vmem>>, vector<1x640xf32>
    %5 = vector.broadcast %4 : vector<1x640xf32> to vector<8x640xf32>
    %6 = arith.addf %3, %5 : vector<8x640xf32>
    %cst_5 = arith.constant 0.000000e+00 : f32
    %7 = vector.broadcast %cst_5 : f32 to vector<8x640xf32>
    %8 = arith.maximumf %6, %7 : vector<8x640xf32>
    %9 = arith.truncf %8 : vector<8x640xf32> to vector<8x640xbf16>
    %10 = vector.extract_strided_slice %9 {offsets = [0, 0], sizes = [8, 128], strides = [1, 1]} : vector<8x640xbf16> to vector<8x128xbf16>
    %11 = vector.extract_strided_slice %9 {offsets = [0, 128], sizes = [8, 512], strides = [1, 1]} : vector<8x640xbf16> to vector<8x512xbf16>
    %c0_6 = arith.constant 0 : index
    %c0_7 = arith.constant 0 : index
    %12 = vector.load %arg4[%c0_6, %c0_7] : memref<128x128xbf16, #tpu.memory_space<vmem>>, vector<128x128xbf16>
    %cst_8 = arith.constant dense<0.000000e+00> : vector<8x128xf32>
    %13 = tpu.matmul %10, %12, %cst_8 {dimension_numbers = #tpu.dot_dimension_numbers<[1], [0], [0], [1], [0, 0, 1, 1], [], []>} : vector<8x128xbf16>, vector<128x128xbf16>, vector<8x128xf32> -> vector<8x128xf32>
    %c0_9 = arith.constant 0 : index
    %c0_10 = arith.constant 0 : index
    %14 = vector.load %arg5[%c0_9, %c0_10] : memref<1x128xf32, #tpu.memory_space<vmem>>, vector<1x128xf32>
    %15 = vector.broadcast %14 : vector<1x128xf32> to vector<8x128xf32>
    %16 = arith.addf %13, %15 : vector<8x128xf32>
    %cst_11 = arith.constant 0.000000e+00 : f32
    %17 = vector.broadcast %cst_11 : f32 to vector<8x128xf32>
    %18 = arith.maximumf %16, %17 : vector<8x128xf32>
    %19 = arith.truncf %18 : vector<8x128xf32> to vector<8x128xbf16>
    %c0_12 = arith.constant 0 : index
    %c0_13 = arith.constant 0 : index
    %20 = vector.load %arg6[%c0_12, %c0_13] : memref<128x128xbf16, #tpu.memory_space<vmem>>, vector<128x128xbf16>
    %cst_14 = arith.constant dense<0.000000e+00> : vector<8x128xf32>
    %21 = tpu.matmul %19, %20, %cst_14 {dimension_numbers = #tpu.dot_dimension_numbers<[1], [0], [0], [1], [0, 0, 1, 1], [], []>} : vector<8x128xbf16>, vector<128x128xbf16>, vector<8x128xf32> -> vector<8x128xf32>
    %c0_15 = arith.constant 0 : index
    %c0_16 = arith.constant 0 : index
    %22 = vector.load %arg7[%c0_15, %c0_16] : memref<1x128xf32, #tpu.memory_space<vmem>>, vector<1x128xf32>
    %23 = vector.broadcast %22 : vector<1x128xf32> to vector<8x128xf32>
    %24 = arith.addf %21, %23 : vector<8x128xf32>
    %cst_17 = arith.constant 0.000000e+00 : f32
    %25 = vector.broadcast %cst_17 : f32 to vector<8x128xf32>
    %26 = arith.maximumf %24, %25 : vector<8x128xf32>
    %27 = arith.truncf %26 : vector<8x128xf32> to vector<8x128xbf16>
    %c0_18 = arith.constant 0 : index
    %c0_19 = arith.constant 0 : index
    %28 = vector.load %arg8[%c0_18, %c0_19] : memref<128x128xbf16, #tpu.memory_space<vmem>>, vector<128x128xbf16>
    %cst_20 = arith.constant dense<0.000000e+00> : vector<8x128xf32>
    %29 = tpu.matmul %27, %28, %cst_20 {dimension_numbers = #tpu.dot_dimension_numbers<[1], [0], [0], [1], [0, 0, 1, 1], [], []>} : vector<8x128xbf16>, vector<128x128xbf16>, vector<8x128xf32> -> vector<8x128xf32>
    %c0_21 = arith.constant 0 : index
    %c0_22 = arith.constant 0 : index
    %30 = vector.load %arg9[%c0_21, %c0_22] : memref<1x128xf32, #tpu.memory_space<vmem>>, vector<1x128xf32>
    %31 = vector.broadcast %30 : vector<1x128xf32> to vector<8x128xf32>
    %32 = arith.addf %29, %31 : vector<8x128xf32>
    %cst_23 = arith.constant 0.000000e+00 : f32
    %33 = vector.broadcast %cst_23 : f32 to vector<8x128xf32>
    %34 = arith.subf %33, %32 : vector<8x128xf32>
    %35 = math.exp %34 : vector<8x128xf32>
    %cst_24 = arith.constant 1.000000e+00 : f32
    %36 = vector.broadcast %cst_24 : f32 to vector<8x128xf32>
    %37 = arith.addf %36, %35 : vector<8x128xf32>
    %38 = tpu.reciprocal %37 {approx = true} : vector<8x128xf32> -> vector<8x128xf32>
    %c0_25 = arith.constant 0 : index
    %c0_26 = arith.constant 0 : index
    %39 = vector.load %arg14[%c0_25, %c0_26] : memref<8x128xf32, #tpu.memory_space<vmem>>, vector<8x128xf32>
    tpu.vector_store %arg14[%c0_25, %c0_26], %38 {strides = array<i32>} : memref<8x128xf32, #tpu.memory_space<vmem>>, vector<8x128xf32>,
    %c0_27 = arith.constant 0 : index
    %c0_28 = arith.constant 0 : index
    %40 = vector.load %arg10[%c0_27, %c0_28] : memref<512x512xbf16, #tpu.memory_space<vmem>>, vector<512x512xbf16>
    %cst_29 = arith.constant dense<0.000000e+00> : vector<8x512xf32>
    %41 = tpu.matmul %11, %40, %cst_29 {dimension_numbers = #tpu.dot_dimension_numbers<[1], [0], [0], [1], [0, 0, 1, 1], [], []>} : vector<8x512xbf16>, vector<512x512xbf16>, vector<8x512xf32> -> vector<8x512xf32>
    %c0_30 = arith.constant 0 : index
    %c0_31 = arith.constant 0 : index
    %42 = vector.load %arg11[%c0_30, %c0_31] : memref<1x512xf32, #tpu.memory_space<vmem>>, vector<1x512xf32>
    %43 = vector.broadcast %42 : vector<1x512xf32> to vector<8x512xf32>
    %44 = arith.addf %41, %43 : vector<8x512xf32>
    %cst_32 = arith.constant 0.000000e+00 : f32
    %45 = vector.broadcast %cst_32 : f32 to vector<8x512xf32>
    %46 = arith.maximumf %44, %45 : vector<8x512xf32>
    %47 = arith.truncf %46 : vector<8x512xf32> to vector<8x512xbf16>
    %c0_33 = arith.constant 0 : index
    %c0_34 = arith.constant 0 : index
    %48 = vector.load %arg12[%c0_33, %c0_34] : memref<512x128xbf16, #tpu.memory_space<vmem>>, vector<512x128xbf16>
    %cst_35 = arith.constant dense<0.000000e+00> : vector<8x128xf32>
    %49 = tpu.matmul %47, %48, %cst_35 {dimension_numbers = #tpu.dot_dimension_numbers<[1], [0], [0], [1], [0, 0, 1, 1], [], []>} : vector<8x512xbf16>, vector<512x128xbf16>, vector<8x128xf32> -> vector<8x128xf32>
    %c0_36 = arith.constant 0 : index
    %c0_37 = arith.constant 0 : index
    %50 = vector.load %arg13[%c0_36, %c0_37] : memref<1x128xf32, #tpu.memory_space<vmem>>, vector<1x128xf32>
    %51 = vector.broadcast %50 : vector<1x128xf32> to vector<8x128xf32>
    %52 = arith.addf %49, %51 : vector<8x128xf32>
    %c0_38 = arith.constant 0 : index
    %c0_39 = arith.constant 0 : index
    %53 = vector.load %arg15[%c0_38, %c0_39] : memref<8x128xf32, #tpu.memory_space<vmem>>, vector<8x128xf32>
    tpu.vector_store %arg15[%c0_38, %c0_39], %52 {strides = array<i32>} : memref<8x128xf32, #tpu.memory_space<vmem>>, vector<8x128xf32>,
    return
  }
  func.func @transform_0(%arg0: i32) -> (i32, i32) {
    %c0_i32 = arith.constant 0 : i32
    %c0_i32_0 = arith.constant 0 : i32
    return %arg0, %c0_i32 : i32, i32
  }
  func.func @transform_1(%arg0: i32) -> (i32, i32) {
    %c0_i32 = arith.constant 0 : i32
    %c0_i32_0 = arith.constant 0 : i32
    %c0_i32_1 = arith.constant 0 : i32
    return %c0_i32, %c0_i32_0 : i32, i32
  }
  func.func @transform_2(%arg0: i32) -> (i32, i32) {
    %c0_i32 = arith.constant 0 : i32
    %c0_i32_0 = arith.constant 0 : i32
    %c0_i32_1 = arith.constant 0 : i32
    return %c0_i32, %c0_i32_0 : i32, i32
  }
  func.func @transform_3(%arg0: i32) -> (i32, i32) {
    %c0_i32 = arith.constant 0 : i32
    %c0_i32_0 = arith.constant 0 : i32
    %c0_i32_1 = arith.constant 0 : i32
    return %c0_i32, %c0_i32_0 : i32, i32
  }
  func.func @transform_4(%arg0: i32) -> (i32, i32) {
    %c0_i32 = arith.constant 0 : i32
    %c0_i32_0 = arith.constant 0 : i32
    %c0_i32_1 = arith.constant 0 : i32
    return %c0_i32, %c0_i32_0 : i32, i32
  }
  func.func @transform_5(%arg0: i32) -> (i32, i32) {
    %c0_i32 = arith.constant 0 : i32
    %c0_i32_0 = arith.constant 0 : i32
    %c0_i32_1 = arith.constant 0 : i32
    return %c0_i32, %c0_i32_0 : i32, i32
  }
  func.func @transform_6(%arg0: i32) -> (i32, i32) {
    %c0_i32 = arith.constant 0 : i32
    %c0_i32_0 = arith.constant 0 : i32
    %c0_i32_1 = arith.constant 0 : i32
    return %c0_i32, %c0_i32_0 : i32, i32
  }
  func.func @transform_7(%arg0: i32) -> (i32, i32) {
    %c0_i32 = arith.constant 0 : i32
    %c0_i32_0 = arith.constant 0 : i32
    %c0_i32_1 = arith.constant 0 : i32
    return %c0_i32, %c0_i32_0 : i32, i32
  }
  func.func @transform_8(%arg0: i32) -> (i32, i32) {
    %c0_i32 = arith.constant 0 : i32
    %c0_i32_0 = arith.constant 0 : i32
    %c0_i32_1 = arith.constant 0 : i32
    return %c0_i32, %c0_i32_0 : i32, i32
  }
  func.func @transform_9(%arg0: i32) -> (i32, i32) {
    %c0_i32 = arith.constant 0 : i32
    %c0_i32_0 = arith.constant 0 : i32
    %c0_i32_1 = arith.constant 0 : i32
    return %c0_i32, %c0_i32_0 : i32, i32
  }
  func.func @transform_10(%arg0: i32) -> (i32, i32) {
    %c0_i32 = arith.constant 0 : i32
    %c0_i32_0 = arith.constant 0 : i32
    %c0_i32_1 = arith.constant 0 : i32
    return %c0_i32, %c0_i32_0 : i32, i32
  }
  func.func @transform_11(%arg0: i32) -> (i32, i32) {
    %c0_i32 = arith.constant 0 : i32
    %c0_i32_0 = arith.constant 0 : i32
    %c0_i32_1 = arith.constant 0 : i32
    return %c0_i32, %c0_i32_0 : i32, i32
  }
  func.func @transform_12(%arg0: i32) -> (i32, i32) {
    %c0_i32 = arith.constant 0 : i32
    %c0_i32_0 = arith.constant 0 : i32
    %c0_i32_1 = arith.constant 0 : i32
    return %c0_i32, %c0_i32_0 : i32, i32
  }
  func.func @transform_13(%arg0: i32) -> (i32, i32) {
    %c0_i32 = arith.constant 0 : i32
    %c0_i32_0 = arith.constant 0 : i32
    return %arg0, %c0_i32 : i32, i32
  }
  func.func @transform_14(%arg0: i32) -> (i32, i32) {
    %c0_i32 = arith.constant 0 : i32
    %c0_i32_0 = arith.constant 0 : i32
    return %arg0, %c0_i32 : i32, i32
  }
}

</mosaic_0001>

<llo_original>
// kernel: tpu_custom_call.1
$region0: #{tpu_custom_call.1}
  #allocation0 [shape = 'u32[]', space=smem, size = 0x4, offset = 0x4, fixed_abs, tag = 'smem constant byte address 0x4 - core index']
  #allocation1 [shape = 'u32[144,128]{1,0:T(1,128)}', space=vmem, size = 0x12000, scoped, tag = 'internal scratch']
  %s0 = inlined_call_operand.hbm [shape: f32[8,32], index: 0, kind: input, shape index: {}]
  %s1 = inlined_call_operand.hbm [shape: bf16[32,640], index: 1, kind: input, shape index: {}]
  %s2 = inlined_call_operand.vmem [shape: f32[1,640], index: 2, kind: input, shape index: {}]
  %s3 = inlined_call_operand.hbm [shape: bf16[128,128], index: 3, kind: input, shape index: {}]
  %s4 = inlined_call_operand.vmem [shape: f32[1,128], index: 4, kind: input, shape index: {}]
  %s5 = inlined_call_operand.hbm [shape: bf16[128,128], index: 5, kind: input, shape index: {}]
  %s6 = inlined_call_operand.vmem [shape: f32[1,128], index: 6, kind: input, shape index: {}]
  %s7 = inlined_call_operand.hbm [shape: bf16[128,128], index: 7, kind: input, shape index: {}]
  %s8 = inlined_call_operand.vmem [shape: f32[1,128], index: 8, kind: input, shape index: {}]
  %s9 = inlined_call_operand.hbm [shape: bf16[512,512], index: 9, kind: input, shape index: {}]
  %s10 = inlined_call_operand.vmem [shape: f32[1,512], index: 10, kind: input, shape index: {}]
  %s11 = inlined_call_operand.hbm [shape: bf16[512,128], index: 11, kind: input, shape index: {}]
  %s12 = inlined_call_operand.vmem [shape: f32[1,128], index: 12, kind: input, shape index: {}]
  %s13 = inlined_call_operand.hbm [shape: f32[8,128], index: 13, kind: output, shape index: {0}]
  %s14 = inlined_call_operand.hbm [shape: f32[8,128], index: 14, kind: output, shape index: {1}]
  %15 = xla_tuple %s13, %s14
  %s16 = sld [smem:[#allocation0]]
  $region98: #{tpu_custom_call.1} parent=0
    _
  %s18 = ssub.s32 1, %s16
  %s19 = scalar_select 0, %s18, %s16
  $region1: #{tpu_custom_call.1} parent=0
    #allocation2 [shape = 'u8[4096]{0}', space=vmem, size = 0x1000, scoped, tag = 'input window, operand 0, single buffered']
    #allocation3 [shape = 's32[1]{0}', space=sflag, size = 0x4, scoped, tag = 'scoped memory for tpu_custom_call.1']
    #allocation4 [shape = 's32[1]{0}', space=sflag, size = 0x4, scoped, tag = 'scoped memory for tpu_custom_call.1']
    #allocation5 [shape = 'u8[40960]{0}', space=vmem, size = 0xa000, scoped, tag = 'input window, operand 1, single buffered']
    #allocation6 [shape = 's32[1]{0}', space=sflag, size = 0x4, scoped, tag = 'scoped memory for tpu_custom_call.1']
    #allocation7 [shape = 'u8[32768]{0}', space=vmem, size = 0x8000, scoped, tag = 'input window, operand 3, single buffered']
    #allocation8 [shape = 'u8[32768]{0}', space=vmem, size = 0x8000, scoped, tag = 'input window, operand 5, single buffered']
    #allocation9 [shape = 's32[1]{0}', space=sflag, size = 0x4, scoped, tag = 'scoped memory for tpu_custom_call.1']
    #allocation10 [shape = 'u8[32768]{0}', space=vmem, size = 0x8000, scoped, tag = 'input window, operand 7, single buffered']
    #allocation11 [shape = 'u8[524288]{0}', space=vmem, size = 0x80000, scoped, tag = 'input window, operand 9, single buffered']
    #allocation12 [shape = 's32[1]{0}', space=sflag, size = 0x4, scoped, tag = 'scoped memory for tpu_custom_call.1']
    #allocation13 [shape = 'u8[131072]{0}', space=vmem, size = 0x20000, scoped, tag = 'input window, operand 11, single buffered']
    #allocation14 [shape = 'u8[4096]{0}', space=vmem, size = 0x1000, scoped, tag = 'output window, operand 0, single buffered']
    #allocation15 [shape = 'u8[4096]{0}', space=vmem, size = 0x1000, scoped, tag = 'output window, operand 1, single buffered']
    #allocation16 [shape = 's32[1]{0}', space=sflag, size = 0x4, scoped, tag = 'scoped memory for tpu_custom_call.1']
    %20 = vsyncpa [#allocation3], 0
    %21 = vsyncpa [#allocation6], 0
    %22 = vsyncpa [#allocation9], 0
    %23 = vsyncpa [#allocation12], 0
    %24 = vsyncpa [#allocation4], 0
    %25 = vsyncpa [#allocation16], 0
    // Predicated region
    $region2: #{tpu_custom_call.1} parent=1 // pred_check
      _
    $region3: #{tpu_custom_call.1} parent=1 // pred_check_branch
      %27 = sbr.rel (0) target = $region5
    $region4: #{tpu_custom_call.1} parent=1 // pred_region
      %s29 = ssub.s32 128, 128
      %30 = vsyncadd [#allocation3], %s29
      %s32 = sshll.u32 [#allocation2], 4
      %s33 = int_to_ptr.vmem [resolvable:$true] %s32
      %35 = dma.hbm_to_vmem [thread:$0]  %s0, 128, %s33, [#allocation3]
    $region5: #{tpu_custom_call.1} parent=1 // pred_fallthru
      _
    // Predicated region
    $region6: #{tpu_custom_call.1} parent=1 // pred_check
      _
    $region7: #{tpu_custom_call.1} parent=1 // pred_check_branch
      %37 = sbr.rel (0) target = $region9
    $region8: #{tpu_custom_call.1} parent=1 // pred_region
      %s39 = ssub.s32 1280, 1280
      %40 = vsyncadd [#allocation6], %s39
      %s41 = sshll.u32 [#allocation5], 4
      %s42 = int_to_ptr.vmem [resolvable:$true] %s41
      %47 = dma.hbm_to_vmem [thread:$0]  %s1, 1280, %s42, [#allocation6], 320, 320, 20
    $region9: #{tpu_custom_call.1} parent=1 // pred_fallthru
      _
    // Predicated region
    $region10: #{tpu_custom_call.1} parent=1 // pred_check
      _
    $region11: #{tpu_custom_call.1} parent=1 // pred_check_branch
      %49 = sbr.rel (0) target = $region13
    $region12: #{tpu_custom_call.1} parent=1 // pred_region
      _
    $region13: #{tpu_custom_call.1} parent=1 // pred_fallthru
      _
    // Predicated region
    $region14: #{tpu_custom_call.1} parent=1 // pred_check
      _
    $region15: #{tpu_custom_call.1} parent=1 // pred_check_branch
      %51 = sbr.rel (0) target = $region17
    $region16: #{tpu_custom_call.1} parent=1 // pred_region
      %s53 = ssub.s32 1024, 1024
      %54 = vsyncadd [#allocation6], %s53
      %s55 = sshll.u32 [#allocation7], 4
      %s56 = int_to_ptr.vmem [resolvable:$true] %s55
      %61 = dma.hbm_to_vmem [thread:$0]  %s3, 1024, %s56, [#allocation6], 64, 64, 4
    $region17: #{tpu_custom_call.1} parent=1 // pred_fallthru
      _
    // Predicated region
    $region18: #{tpu_custom_call.1} parent=1 // pred_check
      _
    $region19: #{tpu_custom_call.1} parent=1 // pred_check_branch
      %63 = sbr.rel (0) target = $region21
    $region20: #{tpu_custom_call.1} parent=1 // pred_region
      _
    $region21: #{tpu_custom_call.1} parent=1 // pred_fallthru
      _
    // Predicated region
    $region22: #{tpu_custom_call.1} parent=1 // pred_check
      _
    $region23: #{tpu_custom_call.1} parent=1 // pred_check_branch
      %65 = sbr.rel (0) target = $region25
    $region24: #{tpu_custom_call.1} parent=1 // pred_region
      %s67 = ssub.s32 1024, 1024
      %68 = vsyncadd [#allocation9], %s67
      %s69 = sshll.u32 [#allocation8], 4
      %s70 = int_to_ptr.vmem [resolvable:$true] %s69
      %75 = dma.hbm_to_vmem [thread:$0]  %s5, 1024, %s70, [#allocation9], 64, 64, 4
    $region25: #{tpu_custom_call.1} parent=1 // pred_fallthru
      _
    // Predicated region
    $region26: #{tpu_custom_call.1} parent=1 // pred_check
      _
    $region27: #{tpu_custom_call.1} parent=1 // pred_check_branch
      %77 = sbr.rel (0) target = $region29
    $region28: #{tpu_custom_call.1} parent=1 // pred_region
      _
    $region29: #{tpu_custom_call.1} parent=1 // pred_fallthru
      _
    // Predicated region
    $region30: #{tpu_custom_call.1} parent=1 // pred_check
      _
    $region31: #{tpu_custom_call.1} parent=1 // pred_check_branch
      %79 = sbr.rel (0) target = $region33
    $region32: #{tpu_custom_call.1} parent=1 // pred_region
      %s81 = ssub.s32 1024, 1024
      %82 = vsyncadd [#allocation9], %s81
      %s83 = sshll.u32 [#allocation10], 4
      %s84 = int_to_ptr.vmem [resolvable:$true] %s83
      %89 = dma.hbm_to_vmem [thread:$0]  %s7, 1024, %s84, [#allocation9], 64, 64, 4
    $region33: #{tpu_custom_call.1} parent=1 // pred_fallthru
      _
    // Predicated region
    $region34: #{tpu_custom_call.1} parent=1 // pred_check
      _
    $region35: #{tpu_custom_call.1} parent=1 // pred_check_branch
      %91 = sbr.rel (0) target = $region37
    $region36: #{tpu_custom_call.1} parent=1 // pred_region
      _
    $region37: #{tpu_custom_call.1} parent=1 // pred_fallthru
      _
    // Predicated region
    $region38: #{tpu_custom_call.1} parent=1 // pred_check
      _
    $region39: #{tpu_custom_call.1} parent=1 // pred_check_branch
      %93 = sbr.rel (0) target = $region41
    $region40: #{tpu_custom_call.1} parent=1 // pred_region
      %s95 = ssub.s32 16384, 16384
      %96 = vsyncadd [#allocation12], %s95
      %s97 = sshll.u32 [#allocation11], 4
      %s98 = int_to_ptr.vmem [resolvable:$true] %s97
      %103 = dma.hbm_to_vmem [thread:$0]  %s9, 16384, %s98, [#allocation12], 256, 256, 16
    $region41: #{tpu_custom_call.1} parent=1 // pred_fallthru
      _
    // Predicated region
    $region42: #{tpu_custom_call.1} parent=1 // pred_check
      _
    $region43: #{tpu_custom_call.1} parent=1 // pred_check_branch
      %105 = sbr.rel (0) target = $region45
    $region44: #{tpu_custom_call.1} parent=1 // pred_region
      _
    $region45: #{tpu_custom_call.1} parent=1 // pred_fallthru
      _
    // Predicated region
    $region46: #{tpu_custom_call.1} parent=1 // pred_check
      _
    $region47: #{tpu_custom_call.1} parent=1 // pred_check_branch
      %107 = sbr.rel (0) target = $region49
    $region48: #{tpu_custom_call.1} parent=1 // pred_region
      %s109 = ssub.s32 4096, 4096
      %110 = vsyncadd [#allocation12], %s109
      %s111 = sshll.u32 [#allocation13], 4
      %s112 = int_to_ptr.vmem [resolvable:$true] %s111
      %117 = dma.hbm_to_vmem [thread:$0]  %s11, 4096, %s112, [#allocation12], 64, 64, 4
    $region49: #{tpu_custom_call.1} parent=1 // pred_fallthru
      _
    // Predicated region
    $region50: #{tpu_custom_call.1} parent=1 // pred_check
      _
    $region51: #{tpu_custom_call.1} parent=1 // pred_check_branch
      %119 = sbr.rel (0) target = $region53
    $region52: #{tpu_custom_call.1} parent=1 // pred_region
      _
    $region53: #{tpu_custom_call.1} parent=1 // pred_fallthru
      _
    // Predicated region
    $region54: #{tpu_custom_call.1} parent=1 // pred_check
      _
    $region55: #{tpu_custom_call.1} parent=1 // pred_check_branch
      %121 = sbr.rel (0) target = $region57
    $region56: #{tpu_custom_call.1} parent=1 // pred_region
      %122 = dma.done [#allocation3], 128
    $region57: #{tpu_custom_call.1} parent=1 // pred_fallthru
      _
    // Predicated region
    $region58: #{tpu_custom_call.1} parent=1 // pred_check
      _
    $region59: #{tpu_custom_call.1} parent=1 // pred_check_branch
      %124 = sbr.rel (0) target = $region61
    $region60: #{tpu_custom_call.1} parent=1 // pred_region
      %125 = dma.done [#allocation6], 1280
    $region61: #{tpu_custom_call.1} parent=1 // pred_fallthru
      _
    // Predicated region
    $region62: #{tpu_custom_call.1} parent=1 // pred_check
      _
    $region63: #{tpu_custom_call.1} parent=1 // pred_check_branch
      %127 = sbr.rel (0) target = $region65
    $region64: #{tpu_custom_call.1} parent=1 // pred_region
      %128 = dma.done [#allocation6], 1024
    $region65: #{tpu_custom_call.1} parent=1 // pred_fallthru
      _
    // Predicated region
    $region66: #{tpu_custom_call.1} parent=1 // pred_check
      _
    $region67: #{tpu_custom_call.1} parent=1 // pred_check_branch
      %130 = sbr.rel (0) target = $region69
    $region68: #{tpu_custom_call.1} parent=1 // pred_region
      %131 = dma.done [#allocation9], 1024
    $region69: #{tpu_custom_call.1} parent=1 // pred_fallthru
      _
    // Predicated region
    $region70: #{tpu_custom_call.1} parent=1 // pred_check
      _
    $region71: #{tpu_custom_call.1} parent=1 // pred_check_branch
      %133 = sbr.rel (0) target = $region73
    $region72: #{tpu_custom_call.1} parent=1 // pred_region
      %134 = dma.done [#allocation9], 1024
    $region73: #{tpu_custom_call.1} parent=1 // pred_fallthru
      _
    // Predicated region
    $region74: #{tpu_custom_call.1} parent=1 // pred_check
      _
    $region75: #{tpu_custom_call.1} parent=1 // pred_check_branch
      %136 = sbr.rel (0) target = $region77
    $region76: #{tpu_custom_call.1} parent=1 // pred_region
      %137 = dma.done [#allocation12], 16384
    $region77: #{tpu_custom_call.1} parent=1 // pred_fallthru
      _
    // Predicated region
    $region78: #{tpu_custom_call.1} parent=1 // pred_check
      _
    $region79: #{tpu_custom_call.1} parent=1 // pred_check_branch
      %139 = sbr.rel (0) target = $region81
    $region80: #{tpu_custom_call.1} parent=1 // pred_region
      %140 = dma.done [#allocation12], 4096
    $region81: #{tpu_custom_call.1} parent=1 // pred_fallthru
      _
    %v142 = vld [vmem:[#allocation2] sm:$0xff]
    %v143 = vpack.c.bf16 %v142, %v142
    %v144 = vld [vmem:[#allocation5] sm:$0xff]
    %v145 = vld [vmem:[#allocation5 + $0x8] sm:$0xff]
    %v146 = vld [vmem:[#allocation5 + $0x10] sm:$0xf]
    %v147 = vld [vmem:[#allocation5 + $0x14] sm:$0xff]
    %v148 = vld [vmem:[#allocation5 + $0x1c] sm:$0xff]
    %v149 = vld [vmem:[#allocation5 + $0x24] sm:$0xf]
    %v150 = vld [vmem:[#allocation5 + $0x28] sm:$0xff]
    %v151 = vld [vmem:[#allocation5 + $0x30] sm:$0xff]
    %v152 = vld [vmem:[#allocation5 + $0x38] sm:$0xf]
    %v153 = vld [vmem:[#allocation5 + $0x3c] sm:$0xff]
    %v154 = vld [vmem:[#allocation5 + $0x44] sm:$0xff]
    %v155 = vld [vmem:[#allocation5 + $0x4c] sm:$0xf]
    %v156 = vld [vmem:[%s2] sm:$0x1f]
    %v158 = vlaneseq
    %v159 = vshrl.u32 %v158, 7
    %v160 = vsub.s32 0, %v159
    %v161 = vrot.slane %v156, %v160
    %v162 = vlaneseq
    %v163 = vshrl.u32 %v162, 7
    %v164 = vsub.s32 1, %v163
    %v165 = vrot.slane %v156, %v164
    %v166 = vlaneseq
    %v167 = vshrl.u32 %v166, 7
    %v168 = vsub.s32 2, %v167
    %v169 = vrot.slane %v156, %v168
    %v170 = vlaneseq
    %v171 = vshrl.u32 %v170, 7
    %v172 = vsub.s32 3, %v171
    %v173 = vrot.slane %v156, %v172
    %v174 = vlaneseq
    %v175 = vshrl.u32 %v174, 7
    %v176 = vsub.s32 4, %v175
    %v177 = vrot.slane %v156, %v176
    %v195 = vunpack.c.l.b16 %v144
    %v196 = vunpack.c.h.b16 %v144
    %v197 = vunpack.c.l.b16 %v145
    %v198 = vunpack.c.h.b16 %v145
    %v199 = vunpack.c.l.b16 %v146
    %v200 = vunpack.c.l.b16 %v147
    %v201 = vunpack.c.h.b16 %v147
    %v202 = vunpack.c.l.b16 %v148
    %v203 = vunpack.c.h.b16 %v148
    %v204 = vunpack.c.l.b16 %v149
    %v205 = vunpack.c.l.b16 %v150
    %v206 = vunpack.c.h.b16 %v150
    %v207 = vunpack.c.l.b16 %v151
    %v208 = vunpack.c.h.b16 %v151
    %v209 = vunpack.c.l.b16 %v152
    %v210 = vunpack.c.l.b16 %v153
    %v211 = vunpack.c.h.b16 %v153
    %v212 = vunpack.c.l.b16 %v154
    %v213 = vunpack.c.h.b16 %v154
    %v214 = vunpack.c.l.b16 %v155
    %v215 = vpack.c.b16 %v200, %v195
    %v216 = vpack.c.b16 %v201, %v196
    %v217 = vpack.c.b16 %v202, %v197
    %v218 = vpack.c.b16 %v203, %v198
    %v219 = vpack.c.b16 %v204, %v199
    %v220 = vpack.c.b16 %v210, %v205
    %v221 = vpack.c.b16 %v211, %v206
    %v222 = vpack.c.b16 %v212, %v207
    %v223 = vpack.c.b16 %v213, %v208
    %v224 = vpack.c.b16 %v214, %v209
    %vm235 = vcmask 261120
    %v237 = vsel %vm235, %v143, 0
    %239 = vmatprep.subr.bf16.mxu0 %v216
    %240 = vmatpush1.bf16.msra.mxu0 %v215
    %241 = vmatprep.subr.bf16.mxu0 %v221
    %242 = vmatpush1.bf16.msra.mxu0 %v220
    %243 = vmatprep.subr.bf16.mxu0 0
    %244 = vmatpush1.bf16.msra.mxu0 0
    %245 = vmatprep.subr.bf16.mxu0 0
    %246 = vmatpush1.bf16.msra.mxu0 0
    %247 = vmatprep.subr.bf16.mxu0 0
    %248 = vmatpush1.bf16.msra.mxu0 0
    %249 = vmatprep.subr.bf16.mxu0 0
    %250 = vmatpush1.bf16.msra.mxu0 0
    %251 = vmatprep.subr.bf16.mxu0 0
    %252 = vmatpush1.bf16.msra.mxu0 0
    %253 = vmatprep.subr.bf16.mxu0 0
    %254 = vmatpush1.bf16.msra.mxu0 0
    %255 = vmatprep.subr.bf16.mxu0 0
    %256 = vmatpush1.bf16.msra.mxu0 0
    %257 = vmatprep.subr.bf16.mxu0 0
    %258 = vmatpush1.bf16.msra.mxu0 0
    %259 = vmatprep.subr.bf16.mxu0 0
    %260 = vmatpush1.bf16.msra.mxu0 0
    %261 = vmatprep.subr.bf16.mxu0 0
    %262 = vmatpush1.bf16.msra.mxu0 0
    %263 = vmatprep.subr.bf16.mxu0 0
    %264 = vmatpush1.bf16.msra.mxu0 0
    %265 = vmatprep.subr.bf16.mxu0 0
    %266 = vmatpush1.bf16.msra.mxu0 0
    %267 = vmatprep.subr.bf16.mxu0 0
    %268 = vmatpush1.bf16.msra.mxu0 0
    %269 = vmatprep.subr.bf16.mxu0 0
    %270 = vmatpush1.bf16.msra.mxu0 0
    %271 = vmatprep.mubr.bf16.mxu0 0
    %272 = vmatmul.mubr.bf16.gmra.mrb[0].mxu0 %v237
    %v273 = vpop.f32.mrb[0].mxu0
    %v274 = vadd.f32 %v161, %v273
    %v275 = vpop.f32.mrb[0].mxu0
    %v276 = vadd.f32 %v165, %v275
    %v277 = vpop.f32.mrb[0].mxu0
    %v278 = vpop.f32.mrb[0].mxu0
    %279 = vdwg.mxu0
    %280 = vmatprep.subr.bf16.mxu0 %v218
    %281 = vmatpush1.bf16.msra.mxu0 %v217
    %282 = vmatprep.subr.bf16.mxu0 %v223
    %283 = vmatpush1.bf16.msra.mxu0 %v222
    %284 = vmatprep.subr.bf16.mxu0 0
    %285 = vmatpush1.bf16.msra.mxu0 0
    %286 = vmatprep.subr.bf16.mxu0 0
    %287 = vmatpush1.bf16.msra.mxu0 0
    %288 = vmatprep.subr.bf16.mxu0 0
    %289 = vmatpush1.bf16.msra.mxu0 0
    %290 = vmatprep.subr.bf16.mxu0 0
    %291 = vmatpush1.bf16.msra.mxu0 0
    %292 = vmatprep.subr.bf16.mxu0 0
    %293 = vmatpush1.bf16.msra.mxu0 0
    %294 = vmatprep.subr.bf16.mxu0 0
    %295 = vmatpush1.bf16.msra.mxu0 0
    %296 = vmatprep.subr.bf16.mxu0 0
    %297 = vmatpush1.bf16.msra.mxu0 0
    %298 = vmatprep.subr.bf16.mxu0 0
    %299 = vmatpush1.bf16.msra.mxu0 0
    %300 = vmatprep.subr.bf16.mxu0 0
    %301 = vmatpush1.bf16.msra.mxu0 0
    %302 = vmatprep.subr.bf16.mxu0 0
    %303 = vmatpush1.bf16.msra.mxu0 0
    %304 = vmatprep.subr.bf16.mxu0 0
    %305 = vmatpush1.bf16.msra.mxu0 0
    %306 = vmatprep.subr.bf16.mxu0 0
    %307 = vmatpush1.bf16.msra.mxu0 0
    %308 = vmatprep.subr.bf16.mxu0 0
    %309 = vmatpush1.bf16.msra.mxu0 0
    %310 = vmatprep.subr.bf16.mxu0 0
    %311 = vmatpush1.bf16.msra.mxu0 0
    %312 = vmatprep.mubr.bf16.mxu0 0
    %313 = vmatmul.mubr.bf16.gmra.mrb[0].mxu0 %v237
    %v314 = vpop.f32.mrb[0].mxu0
    %v315 = vadd.f32 %v169, %v314
    %v316 = vpop.f32.mrb[0].mxu0
    %v317 = vadd.f32 %v173, %v316
    %v318 = vpop.f32.mrb[0].mxu0
    %v319 = vpop.f32.mrb[0].mxu0
    %320 = vdwg.mxu0
    %321 = vmatprep.subr.bf16.mxu0 0
    %322 = vmatpush1.bf16.msra.mxu0 %v219
    %323 = vmatprep.subr.bf16.mxu0 0
    %324 = vmatpush1.bf16.msra.mxu0 %v224
    %325 = vmatprep.subr.bf16.mxu0 0
    %326 = vmatpush1.bf16.msra.mxu0 0
    %327 = vmatprep.subr.bf16.mxu0 0
    %328 = vmatpush1.bf16.msra.mxu0 0
    %329 = vmatprep.subr.bf16.mxu0 0
    %330 = vmatpush1.bf16.msra.mxu0 0
    %331 = vmatprep.subr.bf16.mxu0 0
    %332 = vmatpush1.bf16.msra.mxu0 0
    %333 = vmatprep.subr.bf16.mxu0 0
    %334 = vmatpush1.bf16.msra.mxu0 0
    %335 = vmatprep.subr.bf16.mxu0 0
    %336 = vmatpush1.bf16.msra.mxu0 0
    %337 = vmatprep.subr.bf16.mxu0 0
    %338 = vmatpush1.bf16.msra.mxu0 0
    %339 = vmatprep.subr.bf16.mxu0 0
    %340 = vmatpush1.bf16.msra.mxu0 0
    %341 = vmatprep.subr.bf16.mxu0 0
    %342 = vmatpush1.bf16.msra.mxu0 0
    %343 = vmatprep.subr.bf16.mxu0 0
    %344 = vmatpush1.bf16.msra.mxu0 0
    %345 = vmatprep.subr.bf16.mxu0 0
    %346 = vmatpush1.bf16.msra.mxu0 0
    %347 = vmatprep.subr.bf16.mxu0 0
    %348 = vmatpush1.bf16.msra.mxu0 0
    %349 = vmatprep.subr.bf16.mxu0 0
    %350 = vmatpush1.bf16.msra.mxu0 0
    %351 = vmatprep.subr.bf16.mxu0 0
    %352 = vmatpush1.bf16.msra.mxu0 0
    %353 = vmatprep.mubr.bf16.mxu0 0
    %354 = vmatmul.mubr.bf16.gmra.mrb[0].mxu0 %v237
    %v355 = vpop.f32.mrb[0].mxu0
    %v356 = vadd.f32 %v177, %v355
    %v357 = vpop.f32.mrb[0].mxu0
    %v358 = vpop.f32.mrb[0].mxu0
    %v359 = vpop.f32.mrb[0].mxu0
    %360 = vdwg.mxu0
    %v361 = vmax.f32 %v274, 0.0
    %v362 = vmax.f32 %v276, 0.0
    %v363 = vmax.f32 %v315, 0.0
    %v364 = vmax.f32 %v317, 0.0
    %v365 = vmax.f32 %v356, 0.0
    %v366 = vpack.c.bf16 %v361, %v361
    %v367 = vpack.c.bf16 %v362, %v362
    %v368 = vpack.c.bf16 %v363, %v363
    %v369 = vpack.c.bf16 %v364, %v364
    %v370 = vpack.c.bf16 %v365, %v365
    %v371 = vld [vmem:[#allocation7] sm:$0xf]
    %v372 = vld [vmem:[#allocation7 + $0x4] sm:$0xf]
    %v373 = vld [vmem:[#allocation7 + $0x8] sm:$0xf]
    %v374 = vld [vmem:[#allocation7 + $0xc] sm:$0xf]
    %v375 = vld [vmem:[#allocation7 + $0x10] sm:$0xf]
    %v376 = vld [vmem:[#allocation7 + $0x14] sm:$0xf]
    %v377 = vld [vmem:[#allocation7 + $0x18] sm:$0xf]
    %v378 = vld [vmem:[#allocation7 + $0x1c] sm:$0xf]
    %v379 = vld [vmem:[#allocation7 + $0x20] sm:$0xf]
    %v380 = vld [vmem:[#allocation7 + $0x24] sm:$0xf]
    %v381 = vld [vmem:[#allocation7 + $0x28] sm:$0xf]
    %v382 = vld [vmem:[#allocation7 + $0x2c] sm:$0xf]
    %v383 = vld [vmem:[#allocation7 + $0x30] sm:$0xf]
    %v384 = vld [vmem:[#allocation7 + $0x34] sm:$0xf]
    %v385 = vld [vmem:[#allocation7 + $0x38] sm:$0xf]
    %v386 = vld [vmem:[#allocation7 + $0x3c] sm:$0xf]
    %v387 = vld [vmem:[%s4] sm:$0x1]
    %v389 = vlaneseq
    %v390 = vshrl.u32 %v389, 7
    %v391 = vsub.s32 0, %v390
    %v392 = vrot.slane %v387, %v391
    %v410 = vunpack.c.l.b16 %v371
    %v411 = vunpack.c.l.b16 %v372
    %v412 = vunpack.c.l.b16 %v373
    %v413 = vunpack.c.l.b16 %v374
    %v414 = vunpack.c.l.b16 %v375
    %v415 = vunpack.c.l.b16 %v376
    %v416 = vunpack.c.l.b16 %v377
    %v417 = vunpack.c.l.b16 %v378
    %v418 = vunpack.c.l.b16 %v379
    %v419 = vunpack.c.l.b16 %v380
    %v420 = vunpack.c.l.b16 %v381
    %v421 = vunpack.c.l.b16 %v382
    %v422 = vunpack.c.l.b16 %v383
    %v423 = vunpack.c.l.b16 %v384
    %v424 = vunpack.c.l.b16 %v385
    %v425 = vunpack.c.l.b16 %v386
    %v426 = vpack.c.b16 %v411, %v410
    %v427 = vpack.c.b16 %v413, %v412
    %v428 = vpack.c.b16 %v415, %v414
    %v429 = vpack.c.b16 %v417, %v416
    %v430 = vpack.c.b16 %v419, %v418
    %v431 = vpack.c.b16 %v421, %v420
    %v432 = vpack.c.b16 %v423, %v422
    %v433 = vpack.c.b16 %v425, %v424
    %442 = vmatprep.subr.bf16.mxu0 0
    %443 = vmatpush1.bf16.msra.mxu0 %v426
    %444 = vmatprep.subr.bf16.mxu0 0
    %445 = vmatpush1.bf16.msra.mxu0 %v427
    %446 = vmatprep.subr.bf16.mxu0 0
    %447 = vmatpush1.bf16.msra.mxu0 %v428
    %448 = vmatprep.subr.bf16.mxu0 0
    %449 = vmatpush1.bf16.msra.mxu0 %v429
    %450 = vmatprep.subr.bf16.mxu0 0
    %451 = vmatpush1.bf16.msra.mxu0 %v430
    %452 = vmatprep.subr.bf16.mxu0 0
    %453 = vmatpush1.bf16.msra.mxu0 %v431
    %454 = vmatprep.subr.bf16.mxu0 0
    %455 = vmatpush1.bf16.msra.mxu0 %v432
    %456 = vmatprep.subr.bf16.mxu0 0
    %457 = vmatpush1.bf16.msra.mxu0 %v433
    %458 = vmatprep.subr.bf16.mxu0 0
    %459 = vmatpush1.bf16.msra.mxu0 0
    %460 = vmatprep.subr.bf16.mxu0 0
    %461 = vmatpush1.bf16.msra.mxu0 0
    %462 = vmatprep.subr.bf16.mxu0 0
    %463 = vmatpush1.bf16.msra.mxu0 0
    %464 = vmatprep.subr.bf16.mxu0 0
    %465 = vmatpush1.bf16.msra.mxu0 0
    %466 = vmatprep.subr.bf16.mxu0 0
    %467 = vmatpush1.bf16.msra.mxu0 0
    %468 = vmatprep.subr.bf16.mxu0 0
    %469 = vmatpush1.bf16.msra.mxu0 0
    %470 = vmatprep.subr.bf16.mxu0 0
    %471 = vmatpush1.bf16.msra.mxu0 0
    %472 = vmatprep.subr.bf16.mxu0 0
    %473 = vmatpush1.bf16.msra.mxu0 0
    %474 = vmatprep.mubr.bf16.mxu0 0
    %475 = vmatmul.mubr.bf16.gmra.mrb[0].mxu0 %v366
    %v476 = vpop.f32.mrb[0].mxu0
    %v477 = vadd.f32 %v392, %v476
    %v478 = vpop.f32.mrb[0].mxu0
    %v479 = vpop.f32.mrb[0].mxu0
    %v480 = vpop.f32.mrb[0].mxu0
    %481 = vdwg.mxu0
    %v482 = vmax.f32 %v477, 0.0
    %v483 = vpack.c.bf16 %v482, %v482
    %v484 = vld [vmem:[#allocation8] sm:$0xf]
    %v485 = vld [vmem:[#allocation8 + $0x4] sm:$0xf]
    %v486 = vld [vmem:[#allocation8 + $0x8] sm:$0xf]
    %v487 = vld [vmem:[#allocation8 + $0xc] sm:$0xf]
    %v488 = vld [vmem:[#allocation8 + $0x10] sm:$0xf]
    %v489 = vld [vmem:[#allocation8 + $0x14] sm:$0xf]
    %v490 = vld [vmem:[#allocation8 + $0x18] sm:$0xf]
    %v491 = vld [vmem:[#allocation8 + $0x1c] sm:$0xf]
    %v492 = vld [vmem:[#allocation8 + $0x20] sm:$0xf]
    %v493 = vld [vmem:[#allocation8 + $0x24] sm:$0xf]
    %v494 = vld [vmem:[#allocation8 + $0x28] sm:$0xf]
    %v495 = vld [vmem:[#allocation8 + $0x2c] sm:$0xf]
    %v496 = vld [vmem:[#allocation8 + $0x30] sm:$0xf]
    %v497 = vld [vmem:[#allocation8 + $0x34] sm:$0xf]
    %v498 = vld [vmem:[#allocation8 + $0x38] sm:$0xf]
    %v499 = vld [vmem:[#allocation8 + $0x3c] sm:$0xf]
    %v500 = vld [vmem:[%s6] sm:$0x1]
    %v502 = vlaneseq
    %v503 = vshrl.u32 %v502, 7
    %v504 = vsub.s32 0, %v503
    %v505 = vrot.slane %v500, %v504
    %v523 = vunpack.c.l.b16 %v484
    %v524 = vunpack.c.l.b16 %v485
    %v525 = vunpack.c.l.b16 %v486
    %v526 = vunpack.c.l.b16 %v487
    %v527 = vunpack.c.l.b16 %v488
    %v528 = vunpack.c.l.b16 %v489
    %v529 = vunpack.c.l.b16 %v490
    %v530 = vunpack.c.l.b16 %v491
    %v531 = vunpack.c.l.b16 %v492
    %v532 = vunpack.c.l.b16 %v493
    %v533 = vunpack.c.l.b16 %v494
    %v534 = vunpack.c.l.b16 %v495
    %v535 = vunpack.c.l.b16 %v496
    %v536 = vunpack.c.l.b16 %v497
    %v537 = vunpack.c.l.b16 %v498
    %v538 = vunpack.c.l.b16 %v499
    %v539 = vpack.c.b16 %v524, %v523
    %v540 = vpack.c.b16 %v526, %v525
    %v541 = vpack.c.b16 %v528, %v527
    %v542 = vpack.c.b16 %v530, %v529
    %v543 = vpack.c.b16 %v532, %v531
    %v544 = vpack.c.b16 %v534, %v533
    %v545 = vpack.c.b16 %v536, %v535
    %v546 = vpack.c.b16 %v538, %v537
    %555 = vmatprep.subr.bf16.mxu0 0
    %556 = vmatpush1.bf16.msra.mxu0 %v539
    %557 = vmatprep.subr.bf16.mxu0 0
    %558 = vmatpush1.bf16.msra.mxu0 %v540
    %559 = vmatprep.subr.bf16.mxu0 0
    %560 = vmatpush1.bf16.msra.mxu0 %v541
    %561 = vmatprep.subr.bf16.mxu0 0
    %562 = vmatpush1.bf16.msra.mxu0 %v542
    %563 = vmatprep.subr.bf16.mxu0 0
    %564 = vmatpush1.bf16.msra.mxu0 %v543
    %565 = vmatprep.subr.bf16.mxu0 0
    %566 = vmatpush1.bf16.msra.mxu0 %v544
    %567 = vmatprep.subr.bf16.mxu0 0
    %568 = vmatpush1.bf16.msra.mxu0 %v545
    %569 = vmatprep.subr.bf16.mxu0 0
    %570 = vmatpush1.bf16.msra.mxu0 %v546
    %571 = vmatprep.subr.bf16.mxu0 0
    %572 = vmatpush1.bf16.msra.mxu0 0
    %573 = vmatprep.subr.bf16.mxu0 0
    %574 = vmatpush1.bf16.msra.mxu0 0
    %575 = vmatprep.subr.bf16.mxu0 0
    %576 = vmatpush1.bf16.msra.mxu0 0
    %577 = vmatprep.subr.bf16.mxu0 0
    %578 = vmatpush1.bf16.msra.mxu0 0
    %579 = vmatprep.subr.bf16.mxu0 0
    %580 = vmatpush1.bf16.msra.mxu0 0
    %581 = vmatprep.subr.bf16.mxu0 0
    %582 = vmatpush1.bf16.msra.mxu0 0
    %583 = vmatprep.subr.bf16.mxu0 0
    %584 = vmatpush1.bf16.msra.mxu0 0
    %585 = vmatprep.subr.bf16.mxu0 0
    %586 = vmatpush1.bf16.msra.mxu0 0
    %587 = vmatprep.mubr.bf16.mxu0 0
    %588 = vmatmul.mubr.bf16.gmra.mrb[0].mxu0 %v483
    %v589 = vpop.f32.mrb[0].mxu0
    %v590 = vadd.f32 %v505, %v589
    %v591 = vpop.f32.mrb[0].mxu0
    %v592 = vpop.f32.mrb[0].mxu0
    %v593 = vpop.f32.mrb[0].mxu0
    %594 = vdwg.mxu0
    %v595 = vmax.f32 %v590, 0.0
    %v596 = vpack.c.bf16 %v595, %v595
    %v597 = vld [vmem:[#allocation10] sm:$0xf]
    %v598 = vld [vmem:[#allocation10 + $0x4] sm:$0xf]
    %v599 = vld [vmem:[#allocation10 + $0x8] sm:$0xf]
    %v600 = vld [vmem:[#allocation10 + $0xc] sm:$0xf]
    %v601 = vld [vmem:[#allocation10 + $0x10] sm:$0xf]
    %v602 = vld [vmem:[#allocation10 + $0x14] sm:$0xf]
    %v603 = vld [vmem:[#allocation10 + $0x18] sm:$0xf]
    %v604 = vld [vmem:[#allocation10 + $0x1c] sm:$0xf]
    %v605 = vld [vmem:[#allocation10 + $0x20] sm:$0xf]
    %v606 = vld [vmem:[#allocation10 + $0x24] sm:$0xf]
    %v607 = vld [vmem:[#allocation10 + $0x28] sm:$0xf]
    %v608 = vld [vmem:[#allocation10 + $0x2c] sm:$0xf]
    %v609 = vld [vmem:[#allocation10 + $0x30] sm:$0xf]
    %v610 = vld [vmem:[#allocation10 + $0x34] sm:$0xf]
    %v611 = vld [vmem:[#allocation10 + $0x38] sm:$0xf]
    %v612 = vld [vmem:[#allocation10 + $0x3c] sm:$0xf]
    %v613 = vld [vmem:[%s8] sm:$0x1]
    %v615 = vlaneseq
    %v616 = vshrl.u32 %v615, 7
    %v617 = vsub.s32 0, %v616
    %v618 = vrot.slane %v613, %v617
    %v636 = vunpack.c.l.b16 %v597
    %v637 = vunpack.c.l.b16 %v598
    %v638 = vunpack.c.l.b16 %v599
    %v639 = vunpack.c.l.b16 %v600
    %v640 = vunpack.c.l.b16 %v601
    %v641 = vunpack.c.l.b16 %v602
    %v642 = vunpack.c.l.b16 %v603
    %v643 = vunpack.c.l.b16 %v604
    %v644 = vunpack.c.l.b16 %v605
    %v645 = vunpack.c.l.b16 %v606
    %v646 = vunpack.c.l.b16 %v607
    %v647 = vunpack.c.l.b16 %v608
    %v648 = vunpack.c.l.b16 %v609
    %v649 = vunpack.c.l.b16 %v610
    %v650 = vunpack.c.l.b16 %v611
    %v651 = vunpack.c.l.b16 %v612
    %v652 = vpack.c.b16 %v637, %v636
    %v653 = vpack.c.b16 %v639, %v638
    %v654 = vpack.c.b16 %v641, %v640
    %v655 = vpack.c.b16 %v643, %v642
    %v656 = vpack.c.b16 %v645, %v644
    %v657 = vpack.c.b16 %v647, %v646
    %v658 = vpack.c.b16 %v649, %v648
    %v659 = vpack.c.b16 %v651, %v650
    %668 = vmatprep.subr.bf16.mxu0 0
    %669 = vmatpush1.bf16.msra.mxu0 %v652
    %670 = vmatprep.subr.bf16.mxu0 0
    %671 = vmatpush1.bf16.msra.mxu0 %v653
    %672 = vmatprep.subr.bf16.mxu0 0
    %673 = vmatpush1.bf16.msra.mxu0 %v654
    %674 = vmatprep.subr.bf16.mxu0 0
    %675 = vmatpush1.bf16.msra.mxu0 %v655
    %676 = vmatprep.subr.bf16.mxu0 0
    %677 = vmatpush1.bf16.msra.mxu0 %v656
    %678 = vmatprep.subr.bf16.mxu0 0
    %679 = vmatpush1.bf16.msra.mxu0 %v657
    %680 = vmatprep.subr.bf16.mxu0 0
    %681 = vmatpush1.bf16.msra.mxu0 %v658
    %682 = vmatprep.subr.bf16.mxu0 0
    %683 = vmatpush1.bf16.msra.mxu0 %v659
    %684 = vmatprep.subr.bf16.mxu0 0
    %685 = vmatpush1.bf16.msra.mxu0 0
    %686 = vmatprep.subr.bf16.mxu0 0
    %687 = vmatpush1.bf16.msra.mxu0 0
    %688 = vmatprep.subr.bf16.mxu0 0
    %689 = vmatpush1.bf16.msra.mxu0 0
    %690 = vmatprep.subr.bf16.mxu0 0
    %691 = vmatpush1.bf16.msra.mxu0 0
    %692 = vmatprep.subr.bf16.mxu0 0
    %693 = vmatpush1.bf16.msra.mxu0 0
    %694 = vmatprep.subr.bf16.mxu0 0
    %695 = vmatpush1.bf16.msra.mxu0 0
    %696 = vmatprep.subr.bf16.mxu0 0
    %697 = vmatpush1.bf16.msra.mxu0 0
    %698 = vmatprep.subr.bf16.mxu0 0
    %699 = vmatpush1.bf16.msra.mxu0 0
    %700 = vmatprep.mubr.bf16.mxu0 0
    %701 = vmatmul.mubr.bf16.gmra.mrb[0].mxu0 %v596
    %v702 = vpop.f32.mrb[0].mxu0
    %v703 = vadd.f32 %v618, %v702
    %v704 = vpop.f32.mrb[0].mxu0
    %v705 = vpop.f32.mrb[0].mxu0
    %v706 = vpop.f32.mrb[0].mxu0
    %707 = vdwg.mxu0
    %v708 = vsub.f32 0.0, %v703
    %v709 = vmul.f32 %v708, 1.442695
    %v710 = vpow.pop %v709
    %v711 = vadd.f32 %v710, 1.0
    %v712 = vrcp.pop %v711
    %713 = vst [vmem:[#allocation14] sm:$0xff] %v712
    %v714 = vld [vmem:[#allocation11] sm:$0xff]
    %v715 = vld [vmem:[#allocation11 + $0x8] sm:$0xff]
    %v716 = vld [vmem:[#allocation11 + $0x10] sm:$0xff]
    %v717 = vld [vmem:[#allocation11 + $0x18] sm:$0xff]
    %v718 = vld [vmem:[#allocation11 + $0x20] sm:$0xff]
    %v719 = vld [vmem:[#allocation11 + $0x28] sm:$0xff]
    %v720 = vld [vmem:[#allocation11 + $0x30] sm:$0xff]
    %v721 = vld [vmem:[#allocation11 + $0x38] sm:$0xff]
    %v722 = vld [vmem:[#allocation11 + $0x40] sm:$0xff]
    %v723 = vld [vmem:[#allocation11 + $0x48] sm:$0xff]
    %v724 = vld [vmem:[#allocation11 + $0x50] sm:$0xff]
    %v725 = vld [vmem:[#allocation11 + $0x58] sm:$0xff]
    %v726 = vld [vmem:[#allocation11 + $0x60] sm:$0xff]
    %v727 = vld [vmem:[#allocation11 + $0x68] sm:$0xff]
    %v728 = vld [vmem:[#allocation11 + $0x70] sm:$0xff]
    %v729 = vld [vmem:[#allocation11 + $0x78] sm:$0xff]
    %v730 = vld [vmem:[#allocation11 + $0x80] sm:$0xff]
    %v731 = vld [vmem:[#allocation11 + $0x88] sm:$0xff]
    %v732 = vld [vmem:[#allocation11 + $0x90] sm:$0xff]
    %v733 = vld [vmem:[#allocation11 + $0x98] sm:$0xff]
    %v734 = vld [vmem:[#allocation11 + $0xa0] sm:$0xff]
    %v735 = vld [vmem:[#allocation11 + $0xa8] sm:$0xff]
    %v736 = vld [vmem:[#allocation11 + $0xb0] sm:$0xff]
    %v737 = vld [vmem:[#allocation11 + $0xb8] sm:$0xff]
    %v738 = vld [vmem:[#allocation11 + $0xc0] sm:$0xff]
    %v739 = vld [vmem:[#allocation11 + $0xc8] sm:$0xff]
    %v740 = vld [vmem:[#allocation11 + $0xd0] sm:$0xff]
    %v741 = vld [vmem:[#allocation11 + $0xd8] sm:$0xff]
    %v742 = vld [vmem:[#allocation11 + $0xe0] sm:$0xff]
    %v743 = vld [vmem:[#allocation11 + $0xe8] sm:$0xff]
    %v744 = vld [vmem:[#allocation11 + $0xf0] sm:$0xff]
    %v745 = vld [vmem:[#allocation11 + $0xf8] sm:$0xff]
    %v746 = vld [vmem:[#allocation11 + $0x100] sm:$0xff]
    %v747 = vld [vmem:[#allocation11 + $0x108] sm:$0xff]
    %v748 = vld [vmem:[#allocation11 + $0x110] sm:$0xff]
    %v749 = vld [vmem:[#allocation11 + $0x118] sm:$0xff]
    %v750 = vld [vmem:[#allocation11 + $0x120] sm:$0xff]
    %v751 = vld [vmem:[#allocation11 + $0x128] sm:$0xff]
    %v752 = vld [vmem:[#allocation11 + $0x130] sm:$0xff]
    %v753 = vld [vmem:[#allocation11 + $0x138] sm:$0xff]
    %v754 = vld [vmem:[#allocation11 + $0x140] sm:$0xff]
    %v755 = vld [vmem:[#allocation11 + $0x148] sm:$0xff]
    %v756 = vld [vmem:[#allocation11 + $0x150] sm:$0xff]
    %v757 = vld [vmem:[#allocation11 + $0x158] sm:$0xff]
    %v758 = vld [vmem:[#allocation11 + $0x160] sm:$0xff]
    %v759 = vld [vmem:[#allocation11 + $0x168] sm:$0xff]
    %v760 = vld [vmem:[#allocation11 + $0x170] sm:$0xff]
    %v761 = vld [vmem:[#allocation11 + $0x178] sm:$0xff]
    %v762 = vld [vmem:[#allocation11 + $0x180] sm:$0xff]
    %v763 = vld [vmem:[#allocation11 + $0x188] sm:$0xff]
    %v764 = vld [vmem:[#allocation11 + $0x190] sm:$0xff]
    %v765 = vld [vmem:[#allocation11 + $0x198] sm:$0xff]
    %v766 = vld [vmem:[#allocation11 + $0x1a0] sm:$0xff]
    %v767 = vld [vmem:[#allocation11 + $0x1a8] sm:$0xff]
    %v768 = vld [vmem:[#allocation11 + $0x1b0] sm:$0xff]
    %v769 = vld [vmem:[#allocation11 + $0x1b8] sm:$0xff]
    %v770 = vld [vmem:[#allocation11 + $0x1c0] sm:$0xff]
    %v771 = vld [vmem:[#allocation11 + $0x1c8] sm:$0xff]
    %v772 = vld [vmem:[#allocation11 + $0x1d0] sm:$0xff]
    %v773 = vld [vmem:[#allocation11 + $0x1d8] sm:$0xff]
    %v774 = vld [vmem:[#allocation11 + $0x1e0] sm:$0xff]
    %v775 = vld [vmem:[#allocation11 + $0x1e8] sm:$0xff]
    %v776 = vld [vmem:[#allocation11 + $0x1f0] sm:$0xff]
    %v777 = vld [vmem:[#allocation11 + $0x1f8] sm:$0xff]
    %v778 = vld [vmem:[#allocation11 + $0x200] sm:$0xff]
    %v779 = vld [vmem:[#allocation11 + $0x208] sm:$0xff]
    %v780 = vld [vmem:[#allocation11 + $0x210] sm:$0xff]
    %v781 = vld [vmem:[#allocation11 + $0x218] sm:$0xff]
    %v782 = vld [vmem:[#allocation11 + $0x220] sm:$0xff]
    %v783 = vld [vmem:[#allocation11 + $0x228] sm:$0xff]
    %v784 = vld [vmem:[#allocation11 + $0x230] sm:$0xff]
    %v785 = vld [vmem:[#allocation11 + $0x238] sm:$0xff]
    %v786 = vld [vmem:[#allocation11 + $0x240] sm:$0xff]
    %v787 = vld [vmem:[#allocation11 + $0x248] sm:$0xff]
    %v788 = vld [vmem:[#allocation11 + $0x250] sm:$0xff]
    %v789 = vld [vmem:[#allocation11 + $0x258] sm:$0xff]
    %v790 = vld [vmem:[#allocation11 + $0x260] sm:$0xff]
    %v791 = vld [vmem:[#allocation11 + $0x268] sm:$0xff]
    %v792 = vld [vmem:[#allocation11 + $0x270] sm:$0xff]
    %v793 = vld [vmem:[#allocation11 + $0x278] sm:$0xff]
    %v794 = vld [vmem:[#allocation11 + $0x280] sm:$0xff]
    %v795 = vld [vmem:[#allocation11 + $0x288] sm:$0xff]
    %v796 = vld [vmem:[#allocation11 + $0x290] sm:$0xff]
    %v797 = vld [vmem:[#allocation11 + $0x298] sm:$0xff]
    %v798 = vld [vmem:[#allocation11 + $0x2a0] sm:$0xff]
    %v799 = vld [vmem:[#allocation11 + $0x2a8] sm:$0xff]
    %v800 = vld [vmem:[#allocation11 + $0x2b0] sm:$0xff]
    %v801 = vld [vmem:[#allocation11 + $0x2b8] sm:$0xff]
    %v802 = vld [vmem:[#allocation11 + $0x2c0] sm:$0xff]
    %v803 = vld [vmem:[#allocation11 + $0x2c8] sm:$0xff]
    %v804 = vld [vmem:[#allocation11 + $0x2d0] sm:$0xff]
    %v805 = vld [vmem:[#allocation11 + $0x2d8] sm:$0xff]
    %v806 = vld [vmem:[#allocation11 + $0x2e0] sm:$0xff]
    %v807 = vld [vmem:[#allocation11 + $0x2e8] sm:$0xff]
    %v808 = vld [vmem:[#allocation11 + $0x2f0] sm:$0xff]
    %v809 = vld [vmem:[#allocation11 + $0x2f8] sm:$0xff]
    %v810 = vld [vmem:[#allocation11 + $0x300] sm:$0xff]
    %v811 = vld [vmem:[#allocation11 + $0x308] sm:$0xff]
    %v812 = vld [vmem:[#allocation11 + $0x310] sm:$0xff]
    %v813 = vld [vmem:[#allocation11 + $0x318] sm:$0xff]
    %v814 = vld [vmem:[#allocation11 + $0x320] sm:$0xff]
    %v815 = vld [vmem:[#allocation11 + $0x328] sm:$0xff]
    %v816 = vld [vmem:[#allocation11 + $0x330] sm:$0xff]
    %v817 = vld [vmem:[#allocation11 + $0x338] sm:$0xff]
    %v818 = vld [vmem:[#allocation11 + $0x340] sm:$0xff]
    %v819 = vld [vmem:[#allocation11 + $0x348] sm:$0xff]
    %v820 = vld [vmem:[#allocation11 + $0x350] sm:$0xff]
    %v821 = vld [vmem:[#allocation11 + $0x358] sm:$0xff]
    %v822 = vld [vmem:[#allocation11 + $0x360] sm:$0xff]
    %v823 = vld [vmem:[#allocation11 + $0x368] sm:$0xff]
    %v824 = vld [vmem:[#allocation11 + $0x370] sm:$0xff]
    %v825 = vld [vmem:[#allocation11 + $0x378] sm:$0xff]
    %v826 = vld [vmem:[#allocation11 + $0x380] sm:$0xff]
    %v827 = vld [vmem:[#allocation11 + $0x388] sm:$0xff]
    %v828 = vld [vmem:[#allocation11 + $0x390] sm:$0xff]
    %v829 = vld [vmem:[#allocation11 + $0x398] sm:$0xff]
    %v830 = vld [vmem:[#allocation11 + $0x3a0] sm:$0xff]
    %v831 = vld [vmem:[#allocation11 + $0x3a8] sm:$0xff]
    %v832 = vld [vmem:[#allocation11 + $0x3b0] sm:$0xff]
    %v833 = vld [vmem:[#allocation11 + $0x3b8] sm:$0xff]
    %v834 = vld [vmem:[#allocation11 + $0x3c0] sm:$0xff]
    %v835 = vld [vmem:[#allocation11 + $0x3c8] sm:$0xff]
    %v836 = vld [vmem:[#allocation11 + $0x3d0] sm:$0xff]
    %v837 = vld [vmem:[#allocation11 + $0x3d8] sm:$0xff]
    %v838 = vld [vmem:[#allocation11 + $0x3e0] sm:$0xff]
    %v839 = vld [vmem:[#allocation11 + $0x3e8] sm:$0xff]
    %v840 = vld [vmem:[#allocation11 + $0x3f0] sm:$0xff]
    %v841 = vld [vmem:[#allocation11 + $0x3f8] sm:$0xff]
    %v842 = vld [vmem:[%s10] sm:$0xf]
    %v844 = vlaneseq
    %v845 = vshrl.u32 %v844, 7
    %v846 = vsub.s32 0, %v845
    %v847 = vrot.slane %v842, %v846
    %v848 = vlaneseq
    %v849 = vshrl.u32 %v848, 7
    %v850 = vsub.s32 1, %v849
    %v851 = vrot.slane %v842, %v850
    %v852 = vlaneseq
    %v853 = vshrl.u32 %v852, 7
    %v854 = vsub.s32 2, %v853
    %v855 = vrot.slane %v842, %v854
    %v856 = vlaneseq
    %v857 = vshrl.u32 %v856, 7
    %v858 = vsub.s32 3, %v857
    %v859 = vrot.slane %v842, %v858
    %v992 = vunpack.c.l.b16 %v714
    %v993 = vunpack.c.h.b16 %v714
    %v994 = vunpack.c.l.b16 %v715
    %v995 = vunpack.c.h.b16 %v715
    %v996 = vunpack.c.l.b16 %v716
    %v997 = vunpack.c.h.b16 %v716
    %v998 = vunpack.c.l.b16 %v717
    %v999 = vunpack.c.h.b16 %v717
    %v1000 = vunpack.c.l.b16 %v718
    %v1001 = vunpack.c.h.b16 %v718
    %v1002 = vunpack.c.l.b16 %v719
    %v1003 = vunpack.c.h.b16 %v719
    %v1004 = vunpack.c.l.b16 %v720
    %v1005 = vunpack.c.h.b16 %v720
    %v1006 = vunpack.c.l.b16 %v721
    %v1007 = vunpack.c.h.b16 %v721
    %v1008 = vunpack.c.l.b16 %v722
    %v1009 = vunpack.c.h.b16 %v722
    %v1010 = vunpack.c.l.b16 %v723
    %v1011 = vunpack.c.h.b16 %v723
    %v1012 = vunpack.c.l.b16 %v724
    %v1013 = vunpack.c.h.b16 %v724
    %v1014 = vunpack.c.l.b16 %v725
    %v1015 = vunpack.c.h.b16 %v725
    %v1016 = vunpack.c.l.b16 %v726
    %v1017 = vunpack.c.h.b16 %v726
    %v1018 = vunpack.c.l.b16 %v727
    %v1019 = vunpack.c.h.b16 %v727
    %v1020 = vunpack.c.l.b16 %v728
    %v1021 = vunpack.c.h.b16 %v728
    %v1022 = vunpack.c.l.b16 %v729
    %v1023 = vunpack.c.h.b16 %v729
    %v1024 = vunpack.c.l.b16 %v730
    %v1025 = vunpack.c.h.b16 %v730
    %v1026 = vunpack.c.l.b16 %v731
    %v1027 = vunpack.c.h.b16 %v731
    %v1028 = vunpack.c.l.b16 %v732
    %v1029 = vunpack.c.h.b16 %v732
    %v1030 = vunpack.c.l.b16 %v733
    %v1031 = vunpack.c.h.b16 %v733
    %v1032 = vunpack.c.l.b16 %v734
    %v1033 = vunpack.c.h.b16 %v734
    %v1034 = vunpack.c.l.b16 %v735
    %v1035 = vunpack.c.h.b16 %v735
    %v1036 = vunpack.c.l.b16 %v736
    %v1037 = vunpack.c.h.b16 %v736
    %v1038 = vunpack.c.l.b16 %v737
    %v1039 = vunpack.c.h.b16 %v737
    %v1040 = vunpack.c.l.b16 %v738
    %v1041 = vunpack.c.h.b16 %v738
    %v1042 = vunpack.c.l.b16 %v739
    %v1043 = vunpack.c.h.b16 %v739
    %v1044 = vunpack.c.l.b16 %v740
    %v1045 = vunpack.c.h.b16 %v740
    %v1046 = vunpack.c.l.b16 %v741
    %v1047 = vunpack.c.h.b16 %v741
    %v1048 = vunpack.c.l.b16 %v742
    %v1049 = vunpack.c.h.b16 %v742
    %v1050 = vunpack.c.l.b16 %v743
    %v1051 = vunpack.c.h.b16 %v743
    %v1052 = vunpack.c.l.b16 %v744
    %v1053 = vunpack.c.h.b16 %v744
    %v1054 = vunpack.c.l.b16 %v745
    %v1055 = vunpack.c.h.b16 %v745
    %v1056 = vunpack.c.l.b16 %v746
    %v1057 = vunpack.c.h.b16 %v746
    %v1058 = vunpack.c.l.b16 %v747
    %v1059 = vunpack.c.h.b16 %v747
    %v1060 = vunpack.c.l.b16 %v748
    %v1061 = vunpack.c.h.b16 %v748
    %v1062 = vunpack.c.l.b16 %v749
    %v1063 = vunpack.c.h.b16 %v749
    %v1064 = vunpack.c.l.b16 %v750
    %v1065 = vunpack.c.h.b16 %v750
    %v1066 = vunpack.c.l.b16 %v751
    %v1067 = vunpack.c.h.b16 %v751
    %v1068 = vunpack.c.l.b16 %v752
    %v1069 = vunpack.c.h.b16 %v752
    %v1070 = vunpack.c.l.b16 %v753
    %v1071 = vunpack.c.h.b16 %v753
    %v1072 = vunpack.c.l.b16 %v754
    %v1073 = vunpack.c.h.b16 %v754
    %v1074 = vunpack.c.l.b16 %v755
    %v1075 = vunpack.c.h.b16 %v755
    %v1076 = vunpack.c.l.b16 %v756
    %v1077 = vunpack.c.h.b16 %v756
    %v1078 = vunpack.c.l.b16 %v757
    %v1079 = vunpack.c.h.b16 %v757
    %v1080 = vunpack.c.l.b16 %v758
    %v1081 = vunpack.c.h.b16 %v758
    %v1082 = vunpack.c.l.b16 %v759
    %v1083 = vunpack.c.h.b16 %v759
    %v1084 = vunpack.c.l.b16 %v760
    %v1085 = vunpack.c.h.b16 %v760
    %v1086 = vunpack.c.l.b16 %v761
    %v1087 = vunpack.c.h.b16 %v761
    %v1088 = vunpack.c.l.b16 %v762
    %v1089 = vunpack.c.h.b16 %v762
    %v1090 = vunpack.c.l.b16 %v763
    %v1091 = vunpack.c.h.b16 %v763
    %v1092 = vunpack.c.l.b16 %v764
    %v1093 = vunpack.c.h.b16 %v764
    %v1094 = vunpack.c.l.b16 %v765
    %v1095 = vunpack.c.h.b16 %v765
    %v1096 = vunpack.c.l.b16 %v766
    %v1097 = vunpack.c.h.b16 %v766
    %v1098 = vunpack.c.l.b16 %v767
    %v1099 = vunpack.c.h.b16 %v767
    %v1100 = vunpack.c.l.b16 %v768
    %v1101 = vunpack.c.h.b16 %v768
    %v1102 = vunpack.c.l.b16 %v769
    %v1103 = vunpack.c.h.b16 %v769
    %v1104 = vunpack.c.l.b16 %v770
    %v1105 = vunpack.c.h.b16 %v770
    %v1106 = vunpack.c.l.b16 %v771
    %v1107 = vunpack.c.h.b16 %v771
    %v1108 = vunpack.c.l.b16 %v772
    %v1109 = vunpack.c.h.b16 %v772
    %v1110 = vunpack.c.l.b16 %v773
    %v1111 = vunpack.c.h.b16 %v773
    %v1112 = vunpack.c.l.b16 %v774
    %v1113 = vunpack.c.h.b16 %v774
    %v1114 = vunpack.c.l.b16 %v775
    %v1115 = vunpack.c.h.b16 %v775
    %v1116 = vunpack.c.l.b16 %v776
    %v1117 = vunpack.c.h.b16 %v776
    %v1118 = vunpack.c.l.b16 %v777
    %v1119 = vunpack.c.h.b16 %v777
    %v1120 = vunpack.c.l.b16 %v778
    %v1121 = vunpack.c.h.b16 %v778
    %v1122 = vunpack.c.l.b16 %v779
    %v1123 = vunpack.c.h.b16 %v779
    %v1124 = vunpack.c.l.b16 %v780
    %v1125 = vunpack.c.h.b16 %v780
    %v1126 = vunpack.c.l.b16 %v781
    %v1127 = vunpack.c.h.b16 %v781
    %v1128 = vunpack.c.l.b16 %v782
    %v1129 = vunpack.c.h.b16 %v782
    %v1130 = vunpack.c.l.b16 %v783
    %v1131 = vunpack.c.h.b16 %v783
    %v1132 = vunpack.c.l.b16 %v784
    %v1133 = vunpack.c.h.b16 %v784
    %v1134 = vunpack.c.l.b16 %v785
    %v1135 = vunpack.c.h.b16 %v785
    %v1136 = vunpack.c.l.b16 %v786
    %v1137 = vunpack.c.h.b16 %v786
    %v1138 = vunpack.c.l.b16 %v787
    %v1139 = vunpack.c.h.b16 %v787
    %v1140 = vunpack.c.l.b16 %v788
    %v1141 = vunpack.c.h.b16 %v788
    %v1142 = vunpack.c.l.b16 %v789
    %v1143 = vunpack.c.h.b16 %v789
    %v1144 = vunpack.c.l.b16 %v790
    %v1145 = vunpack.c.h.b16 %v790
    %v1146 = vunpack.c.l.b16 %v791
    %v1147 = vunpack.c.h.b16 %v791
    %v1148 = vunpack.c.l.b16 %v792
    %v1149 = vunpack.c.h.b16 %v792
    %v1150 = vunpack.c.l.b16 %v793
    %v1151 = vunpack.c.h.b16 %v793
    %v1152 = vunpack.c.l.b16 %v794
    %v1153 = vunpack.c.h.b16 %v794
    %v1154 = vunpack.c.l.b16 %v795
    %v1155 = vunpack.c.h.b16 %v795
    %v1156 = vunpack.c.l.b16 %v796
    %v1157 = vunpack.c.h.b16 %v796
    %v1158 = vunpack.c.l.b16 %v797
    %v1159 = vunpack.c.h.b16 %v797
    %v1160 = vunpack.c.l.b16 %v798
    %v1161 = vunpack.c.h.b16 %v798
    %v1162 = vunpack.c.l.b16 %v799
    %v1163 = vunpack.c.h.b16 %v799
    %v1164 = vunpack.c.l.b16 %v800
    %v1165 = vunpack.c.h.b16 %v800
    %v1166 = vunpack.c.l.b16 %v801
    %v1167 = vunpack.c.h.b16 %v801
    %v1168 = vunpack.c.l.b16 %v802
    %v1169 = vunpack.c.h.b16 %v802
    %v1170 = vunpack.c.l.b16 %v803
    %v1171 = vunpack.c.h.b16 %v803
    %v1172 = vunpack.c.l.b16 %v804
    %v1173 = vunpack.c.h.b16 %v804
    %v1174 = vunpack.c.l.b16 %v805
    %v1175 = vunpack.c.h.b16 %v805
    %v1176 = vunpack.c.l.b16 %v806
    %v1177 = vunpack.c.h.b16 %v806
    %v1178 = vunpack.c.l.b16 %v807
    %v1179 = vunpack.c.h.b16 %v807
    %v1180 = vunpack.c.l.b16 %v808
    %v1181 = vunpack.c.h.b16 %v808
    %v1182 = vunpack.c.l.b16 %v809
    %v1183 = vunpack.c.h.b16 %v809
    %v1184 = vunpack.c.l.b16 %v810
    %v1185 = vunpack.c.h.b16 %v810
    %v1186 = vunpack.c.l.b16 %v811
    %v1187 = vunpack.c.h.b16 %v811
    %v1188 = vunpack.c.l.b16 %v812
    %v1189 = vunpack.c.h.b16 %v812
    %v1190 = vunpack.c.l.b16 %v813
    %v1191 = vunpack.c.h.b16 %v813
    %v1192 = vunpack.c.l.b16 %v814
    %v1193 = vunpack.c.h.b16 %v814
    %v1194 = vunpack.c.l.b16 %v815
    %v1195 = vunpack.c.h.b16 %v815
    %v1196 = vunpack.c.l.b16 %v816
    %v1197 = vunpack.c.h.b16 %v816
    %v1198 = vunpack.c.l.b16 %v817
    %v1199 = vunpack.c.h.b16 %v817
    %v1200 = vunpack.c.l.b16 %v818
    %v1201 = vunpack.c.h.b16 %v818
    %v1202 = vunpack.c.l.b16 %v819
    %v1203 = vunpack.c.h.b16 %v819
    %v1204 = vunpack.c.l.b16 %v820
    %v1205 = vunpack.c.h.b16 %v820
    %v1206 = vunpack.c.l.b16 %v821
    %v1207 = vunpack.c.h.b16 %v821
    %v1208 = vunpack.c.l.b16 %v822
    %v1209 = vunpack.c.h.b16 %v822
    %v1210 = vunpack.c.l.b16 %v823
    %v1211 = vunpack.c.h.b16 %v823
    %v1212 = vunpack.c.l.b16 %v824
    %v1213 = vunpack.c.h.b16 %v824
    %v1214 = vunpack.c.l.b16 %v825
    %v1215 = vunpack.c.h.b16 %v825
    %v1216 = vunpack.c.l.b16 %v826
    %v1217 = vunpack.c.h.b16 %v826
    %v1218 = vunpack.c.l.b16 %v827
    %v1219 = vunpack.c.h.b16 %v827
    %v1220 = vunpack.c.l.b16 %v828
    %v1221 = vunpack.c.h.b16 %v828
    %v1222 = vunpack.c.l.b16 %v829
    %v1223 = vunpack.c.h.b16 %v829
    %v1224 = vunpack.c.l.b16 %v830
    %v1225 = vunpack.c.h.b16 %v830
    %v1226 = vunpack.c.l.b16 %v831
    %v1227 = vunpack.c.h.b16 %v831
    %v1228 = vunpack.c.l.b16 %v832
    %v1229 = vunpack.c.h.b16 %v832
    %v1230 = vunpack.c.l.b16 %v833
    %v1231 = vunpack.c.h.b16 %v833
    %v1232 = vunpack.c.l.b16 %v834
    %v1233 = vunpack.c.h.b16 %v834
    %v1234 = vunpack.c.l.b16 %v835
    %v1235 = vunpack.c.h.b16 %v835
    %v1236 = vunpack.c.l.b16 %v836
    %v1237 = vunpack.c.h.b16 %v836
    %v1238 = vunpack.c.l.b16 %v837
    %v1239 = vunpack.c.h.b16 %v837
    %v1240 = vunpack.c.l.b16 %v838
    %v1241 = vunpack.c.h.b16 %v838
    %v1242 = vunpack.c.l.b16 %v839
    %v1243 = vunpack.c.h.b16 %v839
    %v1244 = vunpack.c.l.b16 %v840
    %v1245 = vunpack.c.h.b16 %v840
    %v1246 = vunpack.c.l.b16 %v841
    %v1247 = vunpack.c.h.b16 %v841
    %v1248 = vpack.c.b16 %v996, %v992
    %v1249 = vpack.c.b16 %v997, %v993
    %v1250 = vpack.c.b16 %v998, %v994
    %v1251 = vpack.c.b16 %v999, %v995
    %v1252 = vpack.c.b16 %v1004, %v1000
    %v1253 = vpack.c.b16 %v1005, %v1001
    %v1254 = vpack.c.b16 %v1006, %v1002
    %v1255 = vpack.c.b16 %v1007, %v1003
    %v1256 = vpack.c.b16 %v1012, %v1008
    %v1257 = vpack.c.b16 %v1013, %v1009
    %v1258 = vpack.c.b16 %v1014, %v1010
    %v1259 = vpack.c.b16 %v1015, %v1011
    %v1260 = vpack.c.b16 %v1020, %v1016
    %v1261 = vpack.c.b16 %v1021, %v1017
    %v1262 = vpack.c.b16 %v1022, %v1018
    %v1263 = vpack.c.b16 %v1023, %v1019
    %v1264 = vpack.c.b16 %v1028, %v1024
    %v1265 = vpack.c.b16 %v1029, %v1025
    %v1266 = vpack.c.b16 %v1030, %v1026
    %v1267 = vpack.c.b16 %v1031, %v1027
    %v1268 = vpack.c.b16 %v1036, %v1032
    %v1269 = vpack.c.b16 %v1037, %v1033
    %v1270 = vpack.c.b16 %v1038, %v1034
    %v1271 = vpack.c.b16 %v1039, %v1035
    %v1272 = vpack.c.b16 %v1044, %v1040
    %v1273 = vpack.c.b16 %v1045, %v1041
    %v1274 = vpack.c.b16 %v1046, %v1042
    %v1275 = vpack.c.b16 %v1047, %v1043
    %v1276 = vpack.c.b16 %v1052, %v1048
    %v1277 = vpack.c.b16 %v1053, %v1049
    %v1278 = vpack.c.b16 %v1054, %v1050
    %v1279 = vpack.c.b16 %v1055, %v1051
    %v1280 = vpack.c.b16 %v1060, %v1056
    %v1281 = vpack.c.b16 %v1061, %v1057
    %v1282 = vpack.c.b16 %v1062, %v1058
    %v1283 = vpack.c.b16 %v1063, %v1059
    %v1284 = vpack.c.b16 %v1068, %v1064
    %v1285 = vpack.c.b16 %v1069, %v1065
    %v1286 = vpack.c.b16 %v1070, %v1066
    %v1287 = vpack.c.b16 %v1071, %v1067
    %v1288 = vpack.c.b16 %v1076, %v1072
    %v1289 = vpack.c.b16 %v1077, %v1073
    %v1290 = vpack.c.b16 %v1078, %v1074
    %v1291 = vpack.c.b16 %v1079, %v1075
    %v1292 = vpack.c.b16 %v1084, %v1080
    %v1293 = vpack.c.b16 %v1085, %v1081
    %v1294 = vpack.c.b16 %v1086, %v1082
    %v1295 = vpack.c.b16 %v1087, %v1083
    %v1296 = vpack.c.b16 %v1092, %v1088
    %v1297 = vpack.c.b16 %v1093, %v1089
    %v1298 = vpack.c.b16 %v1094, %v1090
    %v1299 = vpack.c.b16 %v1095, %v1091
    %v1300 = vpack.c.b16 %v1100, %v1096
    %v1301 = vpack.c.b16 %v1101, %v1097
    %v1302 = vpack.c.b16 %v1102, %v1098
    %v1303 = vpack.c.b16 %v1103, %v1099
    %v1304 = vpack.c.b16 %v1108, %v1104
    %v1305 = vpack.c.b16 %v1109, %v1105
    %v1306 = vpack.c.b16 %v1110, %v1106
    %v1307 = vpack.c.b16 %v1111, %v1107
    %v1308 = vpack.c.b16 %v1116, %v1112
    %v1309 = vpack.c.b16 %v1117, %v1113
    %v1310 = vpack.c.b16 %v1118, %v1114
    %v1311 = vpack.c.b16 %v1119, %v1115
    %v1312 = vpack.c.b16 %v1124, %v1120
    %v1313 = vpack.c.b16 %v1125, %v1121
    %v1314 = vpack.c.b16 %v1126, %v1122
    %v1315 = vpack.c.b16 %v1127, %v1123
    %v1316 = vpack.c.b16 %v1132, %v1128
    %v1317 = vpack.c.b16 %v1133, %v1129
    %v1318 = vpack.c.b16 %v1134, %v1130
    %v1319 = vpack.c.b16 %v1135, %v1131
    %v1320 = vpack.c.b16 %v1140, %v1136
    %v1321 = vpack.c.b16 %v1141, %v1137
    %v1322 = vpack.c.b16 %v1142, %v1138
    %v1323 = vpack.c.b16 %v1143, %v1139
    %v1324 = vpack.c.b16 %v1148, %v1144
    %v1325 = vpack.c.b16 %v1149, %v1145
    %v1326 = vpack.c.b16 %v1150, %v1146
    %v1327 = vpack.c.b16 %v1151, %v1147
    %v1328 = vpack.c.b16 %v1156, %v1152
    %v1329 = vpack.c.b16 %v1157, %v1153
    %v1330 = vpack.c.b16 %v1158, %v1154
    %v1331 = vpack.c.b16 %v1159, %v1155
    %v1332 = vpack.c.b16 %v1164, %v1160
    %v1333 = vpack.c.b16 %v1165, %v1161
    %v1334 = vpack.c.b16 %v1166, %v1162
    %v1335 = vpack.c.b16 %v1167, %v1163
    %v1336 = vpack.c.b16 %v1172, %v1168
    %v1337 = vpack.c.b16 %v1173, %v1169
    %v1338 = vpack.c.b16 %v1174, %v1170
    %v1339 = vpack.c.b16 %v1175, %v1171
    %v1340 = vpack.c.b16 %v1180, %v1176
    %v1341 = vpack.c.b16 %v1181, %v1177
    %v1342 = vpack.c.b16 %v1182, %v1178
    %v1343 = vpack.c.b16 %v1183, %v1179
    %v1344 = vpack.c.b16 %v1188, %v1184
    %v1345 = vpack.c.b16 %v1189, %v1185
    %v1346 = vpack.c.b16 %v1190, %v1186
    %v1347 = vpack.c.b16 %v1191, %v1187
    %v1348 = vpack.c.b16 %v1196, %v1192
    %v1349 = vpack.c.b16 %v1197, %v1193
    %v1350 = vpack.c.b16 %v1198, %v1194
    %v1351 = vpack.c.b16 %v1199, %v1195
    %v1352 = vpack.c.b16 %v1204, %v1200
    %v1353 = vpack.c.b16 %v1205, %v1201
    %v1354 = vpack.c.b16 %v1206, %v1202
    %v1355 = vpack.c.b16 %v1207, %v1203
    %v1356 = vpack.c.b16 %v1212, %v1208
    %v1357 = vpack.c.b16 %v1213, %v1209
    %v1358 = vpack.c.b16 %v1214, %v1210
    %v1359 = vpack.c.b16 %v1215, %v1211
    %v1360 = vpack.c.b16 %v1220, %v1216
    %v1361 = vpack.c.b16 %v1221, %v1217
    %v1362 = vpack.c.b16 %v1222, %v1218
    %v1363 = vpack.c.b16 %v1223, %v1219
    %v1364 = vpack.c.b16 %v1228, %v1224
    %v1365 = vpack.c.b16 %v1229, %v1225
    %v1366 = vpack.c.b16 %v1230, %v1226
    %v1367 = vpack.c.b16 %v1231, %v1227
    %v1368 = vpack.c.b16 %v1236, %v1232
    %v1369 = vpack.c.b16 %v1237, %v1233
    %v1370 = vpack.c.b16 %v1238, %v1234
    %v1371 = vpack.c.b16 %v1239, %v1235
    %v1372 = vpack.c.b16 %v1244, %v1240
    %v1373 = vpack.c.b16 %v1245, %v1241
    %v1374 = vpack.c.b16 %v1246, %v1242
    %v1375 = vpack.c.b16 %v1247, %v1243
    %1504 = vmatprep.subr.bf16.mxu0 %v1249
    %1505 = vmatpush1.bf16.msra.mxu0 %v1248
    %1506 = vmatprep.subr.bf16.mxu0 %v1253
    %1507 = vmatpush1.bf16.msra.mxu0 %v1252
    %1508 = vmatprep.subr.bf16.mxu0 %v1257
    %1509 = vmatpush1.bf16.msra.mxu0 %v1256
    %1510 = vmatprep.subr.bf16.mxu0 %v1261
    %1511 = vmatpush1.bf16.msra.mxu0 %v1260
    %1512 = vmatprep.subr.bf16.mxu0 %v1265
    %1513 = vmatpush1.bf16.msra.mxu0 %v1264
    %1514 = vmatprep.subr.bf16.mxu0 %v1269
    %1515 = vmatpush1.bf16.msra.mxu0 %v1268
    %1516 = vmatprep.subr.bf16.mxu0 %v1273
    %1517 = vmatpush1.bf16.msra.mxu0 %v1272
    %1518 = vmatprep.subr.bf16.mxu0 %v1277
    %1519 = vmatpush1.bf16.msra.mxu0 %v1276
    %1520 = vmatprep.subr.bf16.mxu0 %v1281
    %1521 = vmatpush1.bf16.msra.mxu0 %v1280
    %1522 = vmatprep.subr.bf16.mxu0 %v1285
    %1523 = vmatpush1.bf16.msra.mxu0 %v1284
    %1524 = vmatprep.subr.bf16.mxu0 %v1289
    %1525 = vmatpush1.bf16.msra.mxu0 %v1288
    %1526 = vmatprep.subr.bf16.mxu0 %v1293
    %1527 = vmatpush1.bf16.msra.mxu0 %v1292
    %1528 = vmatprep.subr.bf16.mxu0 %v1297
    %1529 = vmatpush1.bf16.msra.mxu0 %v1296
    %1530 = vmatprep.subr.bf16.mxu0 %v1301
    %1531 = vmatpush1.bf16.msra.mxu0 %v1300
    %1532 = vmatprep.subr.bf16.mxu0 %v1305
    %1533 = vmatpush1.bf16.msra.mxu0 %v1304
    %1534 = vmatprep.subr.bf16.mxu0 %v1309
    %1535 = vmatpush1.bf16.msra.mxu0 %v1308
    %1536 = vmatprep.mubr.bf16.mxu0 %v368
    %1537 = vmatmul.mubr.bf16.gmra.mrb[0].mxu0 %v367
    %v1538 = vpop.f32.mrb[0].mxu0
    %v1539 = vadd.f32 %v847, %v1538
    %v1540 = vpop.f32.mrb[0].mxu0
    %v1541 = vadd.f32 %v851, %v1540
    %v1542 = vpop.f32.mrb[0].mxu0
    %v1543 = vpop.f32.mrb[0].mxu0
    %1544 = vdwg.mxu0
    %1545 = vmatprep.subr.bf16.mxu0 %v1313
    %1546 = vmatpush1.bf16.msra.mxu0 %v1312
    %1547 = vmatprep.subr.bf16.mxu0 %v1317
    %1548 = vmatpush1.bf16.msra.mxu0 %v1316
    %1549 = vmatprep.subr.bf16.mxu0 %v1321
    %1550 = vmatpush1.bf16.msra.mxu0 %v1320
    %1551 = vmatprep.subr.bf16.mxu0 %v1325
    %1552 = vmatpush1.bf16.msra.mxu0 %v1324
    %1553 = vmatprep.subr.bf16.mxu0 %v1329
    %1554 = vmatpush1.bf16.msra.mxu0 %v1328
    %1555 = vmatprep.subr.bf16.mxu0 %v1333
    %1556 = vmatpush1.bf16.msra.mxu0 %v1332
    %1557 = vmatprep.subr.bf16.mxu0 %v1337
    %1558 = vmatpush1.bf16.msra.mxu0 %v1336
    %1559 = vmatprep.subr.bf16.mxu0 %v1341
    %1560 = vmatpush1.bf16.msra.mxu0 %v1340
    %1561 = vmatprep.subr.bf16.mxu0 %v1345
    %1562 = vmatpush1.bf16.msra.mxu0 %v1344
    %1563 = vmatprep.subr.bf16.mxu0 %v1349
    %1564 = vmatpush1.bf16.msra.mxu0 %v1348
    %1565 = vmatprep.subr.bf16.mxu0 %v1353
    %1566 = vmatpush1.bf16.msra.mxu0 %v1352
    %1567 = vmatprep.subr.bf16.mxu0 %v1357
    %1568 = vmatpush1.bf16.msra.mxu0 %v1356
    %1569 = vmatprep.subr.bf16.mxu0 %v1361
    %1570 = vmatpush1.bf16.msra.mxu0 %v1360
    %1571 = vmatprep.subr.bf16.mxu0 %v1365
    %1572 = vmatpush1.bf16.msra.mxu0 %v1364
    %1573 = vmatprep.subr.bf16.mxu0 %v1369
    %1574 = vmatpush1.bf16.msra.mxu0 %v1368
    %1575 = vmatprep.subr.bf16.mxu0 %v1373
    %1576 = vmatpush1.bf16.msra.mxu0 %v1372
    %1577 = vmatprep.mubr.bf16.mxu0 %v370
    %1578 = vmatmul.mubr.bf16.gmra.mrb[0].mxu0 %v369
    %v1579 = vpop.f32.mrb[0].mxu0
    %v1580 = vadd.f32 %v1539, %v1579
    %v1581 = vpop.f32.mrb[0].mxu0
    %v1582 = vadd.f32 %v1541, %v1581
    %v1583 = vpop.f32.mrb[0].mxu0
    %v1584 = vpop.f32.mrb[0].mxu0
    %1585 = vdwg.mxu0
    %1586 = vmatprep.subr.bf16.mxu0 %v1251
    %1587 = vmatpush1.bf16.msra.mxu0 %v1250
    %1588 = vmatprep.subr.bf16.mxu0 %v1255
    %1589 = vmatpush1.bf16.msra.mxu0 %v1254
    %1590 = vmatprep.subr.bf16.mxu0 %v1259
    %1591 = vmatpush1.bf16.msra.mxu0 %v1258
    %1592 = vmatprep.subr.bf16.mxu0 %v1263
    %1593 = vmatpush1.bf16.msra.mxu0 %v1262
    %1594 = vmatprep.subr.bf16.mxu0 %v1267
    %1595 = vmatpush1.bf16.msra.mxu0 %v1266
    %1596 = vmatprep.subr.bf16.mxu0 %v1271
    %1597 = vmatpush1.bf16.msra.mxu0 %v1270
    %1598 = vmatprep.subr.bf16.mxu0 %v1275
    %1599 = vmatpush1.bf16.msra.mxu0 %v1274
    %1600 = vmatprep.subr.bf16.mxu0 %v1279
    %1601 = vmatpush1.bf16.msra.mxu0 %v1278
    %1602 = vmatprep.subr.bf16.mxu0 %v1283
    %1603 = vmatpush1.bf16.msra.mxu0 %v1282
    %1604 = vmatprep.subr.bf16.mxu0 %v1287
    %1605 = vmatpush1.bf16.msra.mxu0 %v1286
    %1606 = vmatprep.subr.bf16.mxu0 %v1291
    %1607 = vmatpush1.bf16.msra.mxu0 %v1290
    %1608 = vmatprep.subr.bf16.mxu0 %v1295
    %1609 = vmatpush1.bf16.msra.mxu0 %v1294
    %1610 = vmatprep.subr.bf16.mxu0 %v1299
    %1611 = vmatpush1.bf16.msra.mxu0 %v1298
    %1612 = vmatprep.subr.bf16.mxu0 %v1303
    %1613 = vmatpush1.bf16.msra.mxu0 %v1302
    %1614 = vmatprep.subr.bf16.mxu0 %v1307
    %1615 = vmatpush1.bf16.msra.mxu0 %v1306
    %1616 = vmatprep.subr.bf16.mxu0 %v1311
    %1617 = vmatpush1.bf16.msra.mxu0 %v1310
    %1618 = vmatprep.mubr.bf16.mxu0 %v368
    %1619 = vmatmul.mubr.bf16.gmra.mrb[0].mxu0 %v367
    %v1620 = vpop.f32.mrb[0].mxu0
    %v1621 = vadd.f32 %v855, %v1620
    %v1622 = vpop.f32.mrb[0].mxu0
    %v1623 = vadd.f32 %v859, %v1622
    %v1624 = vpop.f32.mrb[0].mxu0
    %v1625 = vpop.f32.mrb[0].mxu0
    %1626 = vdwg.mxu0
    %1627 = vmatprep.subr.bf16.mxu0 %v1315
    %1628 = vmatpush1.bf16.msra.mxu0 %v1314
    %1629 = vmatprep.subr.bf16.mxu0 %v1319
    %1630 = vmatpush1.bf16.msra.mxu0 %v1318
    %1631 = vmatprep.subr.bf16.mxu0 %v1323
    %1632 = vmatpush1.bf16.msra.mxu0 %v1322
    %1633 = vmatprep.subr.bf16.mxu0 %v1327
    %1634 = vmatpush1.bf16.msra.mxu0 %v1326
    %1635 = vmatprep.subr.bf16.mxu0 %v1331
    %1636 = vmatpush1.bf16.msra.mxu0 %v1330
    %1637 = vmatprep.subr.bf16.mxu0 %v1335
    %1638 = vmatpush1.bf16.msra.mxu0 %v1334
    %1639 = vmatprep.subr.bf16.mxu0 %v1339
    %1640 = vmatpush1.bf16.msra.mxu0 %v1338
    %1641 = vmatprep.subr.bf16.mxu0 %v1343
    %1642 = vmatpush1.bf16.msra.mxu0 %v1342
    %1643 = vmatprep.subr.bf16.mxu0 %v1347
    %1644 = vmatpush1.bf16.msra.mxu0 %v1346
    %1645 = vmatprep.subr.bf16.mxu0 %v1351
    %1646 = vmatpush1.bf16.msra.mxu0 %v1350
    %1647 = vmatprep.subr.bf16.mxu0 %v1355
    %1648 = vmatpush1.bf16.msra.mxu0 %v1354
    %1649 = vmatprep.subr.bf16.mxu0 %v1359
    %1650 = vmatpush1.bf16.msra.mxu0 %v1358
    %1651 = vmatprep.subr.bf16.mxu0 %v1363
    %1652 = vmatpush1.bf16.msra.mxu0 %v1362
    %1653 = vmatprep.subr.bf16.mxu0 %v1367
    %1654 = vmatpush1.bf16.msra.mxu0 %v1366
    %1655 = vmatprep.subr.bf16.mxu0 %v1371
    %1656 = vmatpush1.bf16.msra.mxu0 %v1370
    %1657 = vmatprep.subr.bf16.mxu0 %v1375
    %1658 = vmatpush1.bf16.msra.mxu0 %v1374
    %1659 = vmatprep.mubr.bf16.mxu0 %v370
    %1660 = vmatmul.mubr.bf16.gmra.mrb[0].mxu0 %v369
    %v1661 = vpop.f32.mrb[0].mxu0
    %v1662 = vadd.f32 %v1621, %v1661
    %v1663 = vpop.f32.mrb[0].mxu0
    %v1664 = vadd.f32 %v1623, %v1663
    %v1665 = vpop.f32.mrb[0].mxu0
    %v1666 = vpop.f32.mrb[0].mxu0
    %1667 = vdwg.mxu0
    %v1668 = vmax.f32 %v1580, 0.0
    %v1669 = vmax.f32 %v1582, 0.0
    %v1670 = vmax.f32 %v1662, 0.0
    %v1671 = vmax.f32 %v1664, 0.0
    %v1672 = vpack.c.bf16 %v1668, %v1668
    %v1673 = vpack.c.bf16 %v1669, %v1669
    %v1674 = vpack.c.bf16 %v1670, %v1670
    %v1675 = vpack.c.bf16 %v1671, %v1671
    %v1676 = vld [vmem:[#allocation13] sm:$0xf]
    %v1677 = vld [vmem:[#allocation13 + $0x4] sm:$0xf]
    %v1678 = vld [vmem:[#allocation13 + $0x8] sm:$0xf]
    %v1679 = vld [vmem:[#allocation13 + $0xc] sm:$0xf]
    %v1680 = vld [vmem:[#allocation13 + $0x10] sm:$0xf]
    %v1681 = vld [vmem:[#allocation13 + $0x14] sm:$0xf]
    %v1682 = vld [vmem:[#allocation13 + $0x18] sm:$0xf]
    %v1683 = vld [vmem:[#allocation13 + $0x1c] sm:$0xf]
    %v1684 = vld [vmem:[#allocation13 + $0x20] sm:$0xf]
    %v1685 = vld [vmem:[#allocation13 + $0x24] sm:$0xf]
    %v1686 = vld [vmem:[#allocation13 + $0x28] sm:$0xf]
    %v1687 = vld [vmem:[#allocation13 + $0x2c] sm:$0xf]
    %v1688 = vld [vmem:[#allocation13 + $0x30] sm:$0xf]
    %v1689 = vld [vmem:[#allocation13 + $0x34] sm:$0xf]
    %v1690 = vld [vmem:[#allocation13 + $0x38] sm:$0xf]
    %v1691 = vld [vmem:[#allocation13 + $0x3c] sm:$0xf]
    %v1692 = vld [vmem:[#allocation13 + $0x40] sm:$0xf]
    %v1693 = vld [vmem:[#allocation13 + $0x44] sm:$0xf]
    %v1694 = vld [vmem:[#allocation13 + $0x48] sm:$0xf]
    %v1695 = vld [vmem:[#allocation13 + $0x4c] sm:$0xf]
    %v1696 = vld [vmem:[#allocation13 + $0x50] sm:$0xf]
    %v1697 = vld [vmem:[#allocation13 + $0x54] sm:$0xf]
    %v1698 = vld [vmem:[#allocation13 + $0x58] sm:$0xf]
    %v1699 = vld [vmem:[#allocation13 + $0x5c] sm:$0xf]
    %v1700 = vld [vmem:[#allocation13 + $0x60] sm:$0xf]
    %v1701 = vld [vmem:[#allocation13 + $0x64] sm:$0xf]
    %v1702 = vld [vmem:[#allocation13 + $0x68] sm:$0xf]
    %v1703 = vld [vmem:[#allocation13 + $0x6c] sm:$0xf]
    %v1704 = vld [vmem:[#allocation13 + $0x70] sm:$0xf]
    %v1705 = vld [vmem:[#allocation13 + $0x74] sm:$0xf]
    %v1706 = vld [vmem:[#allocation13 + $0x78] sm:$0xf]
    %v1707 = vld [vmem:[#allocation13 + $0x7c] sm:$0xf]
    %v1708 = vld [vmem:[#allocation13 + $0x80] sm:$0xf]
    %v1709 = vld [vmem:[#allocation13 + $0x84] sm:$0xf]
    %v1710 = vld [vmem:[#allocation13 + $0x88] sm:$0xf]
    %v1711 = vld [vmem:[#allocation13 + $0x8c] sm:$0xf]
    %v1712 = vld [vmem:[#allocation13 + $0x90] sm:$0xf]
    %v1713 = vld [vmem:[#allocation13 + $0x94] sm:$0xf]
    %v1714 = vld [vmem:[#allocation13 + $0x98] sm:$0xf]
    %v1715 = vld [vmem:[#allocation13 + $0x9c] sm:$0xf]
    %v1716 = vld [vmem:[#allocation13 + $0xa0] sm:$0xf]
    %v1717 = vld [vmem:[#allocation13 + $0xa4] sm:$0xf]
    %v1718 = vld [vmem:[#allocation13 + $0xa8] sm:$0xf]
    %v1719 = vld [vmem:[#allocation13 + $0xac] sm:$0xf]
    %v1720 = vld [vmem:[#allocation13 + $0xb0] sm:$0xf]
    %v1721 = vld [vmem:[#allocation13 + $0xb4] sm:$0xf]
    %v1722 = vld [vmem:[#allocation13 + $0xb8] sm:$0xf]
    %v1723 = vld [vmem:[#allocation13 + $0xbc] sm:$0xf]
    %v1724 = vld [vmem:[#allocation13 + $0xc0] sm:$0xf]
    %v1725 = vld [vmem:[#allocation13 + $0xc4] sm:$0xf]
    %v1726 = vld [vmem:[#allocation13 + $0xc8] sm:$0xf]
    %v1727 = vld [vmem:[#allocation13 + $0xcc] sm:$0xf]
    %v1728 = vld [vmem:[#allocation13 + $0xd0] sm:$0xf]
    %v1729 = vld [vmem:[#allocation13 + $0xd4] sm:$0xf]
    %v1730 = vld [vmem:[#allocation13 + $0xd8] sm:$0xf]
    %v1731 = vld [vmem:[#allocation13 + $0xdc] sm:$0xf]
    %v1732 = vld [vmem:[#allocation13 + $0xe0] sm:$0xf]
    %v1733 = vld [vmem:[#allocation13 + $0xe4] sm:$0xf]
    %v1734 = vld [vmem:[#allocation13 + $0xe8] sm:$0xf]
    %v1735 = vld [vmem:[#allocation13 + $0xec] sm:$0xf]
    %v1736 = vld [vmem:[#allocation13 + $0xf0] sm:$0xf]
    %v1737 = vld [vmem:[#allocation13 + $0xf4] sm:$0xf]
    %v1738 = vld [vmem:[#allocation13 + $0xf8] sm:$0xf]
    %v1739 = vld [vmem:[#allocation13 + $0xfc] sm:$0xf]
    %v1740 = vld [vmem:[%s12] sm:$0x1]
    %v1742 = vlaneseq
    %v1743 = vshrl.u32 %v1742, 7
    %v1744 = vsub.s32 0, %v1743
    %v1745 = vrot.slane %v1740, %v1744
    %v1811 = vunpack.c.l.b16 %v1676
    %v1812 = vunpack.c.l.b16 %v1677
    %v1813 = vunpack.c.l.b16 %v1678
    %v1814 = vunpack.c.l.b16 %v1679
    %v1815 = vunpack.c.l.b16 %v1680
    %v1816 = vunpack.c.l.b16 %v1681
    %v1817 = vunpack.c.l.b16 %v1682
    %v1818 = vunpack.c.l.b16 %v1683
    %v1819 = vunpack.c.l.b16 %v1684
    %v1820 = vunpack.c.l.b16 %v1685
    %v1821 = vunpack.c.l.b16 %v1686
    %v1822 = vunpack.c.l.b16 %v1687
    %v1823 = vunpack.c.l.b16 %v1688
    %v1824 = vunpack.c.l.b16 %v1689
    %v1825 = vunpack.c.l.b16 %v1690
    %v1826 = vunpack.c.l.b16 %v1691
    %v1827 = vunpack.c.l.b16 %v1692
    %v1828 = vunpack.c.l.b16 %v1693
    %v1829 = vunpack.c.l.b16 %v1694
    %v1830 = vunpack.c.l.b16 %v1695
    %v1831 = vunpack.c.l.b16 %v1696
    %v1832 = vunpack.c.l.b16 %v1697
    %v1833 = vunpack.c.l.b16 %v1698
    %v1834 = vunpack.c.l.b16 %v1699
    %v1835 = vunpack.c.l.b16 %v1700
    %v1836 = vunpack.c.l.b16 %v1701
    %v1837 = vunpack.c.l.b16 %v1702
    %v1838 = vunpack.c.l.b16 %v1703
    %v1839 = vunpack.c.l.b16 %v1704
    %v1840 = vunpack.c.l.b16 %v1705
    %v1841 = vunpack.c.l.b16 %v1706
    %v1842 = vunpack.c.l.b16 %v1707
    %v1843 = vunpack.c.l.b16 %v1708
    %v1844 = vunpack.c.l.b16 %v1709
    %v1845 = vunpack.c.l.b16 %v1710
    %v1846 = vunpack.c.l.b16 %v1711
    %v1847 = vunpack.c.l.b16 %v1712
    %v1848 = vunpack.c.l.b16 %v1713
    %v1849 = vunpack.c.l.b16 %v1714
    %v1850 = vunpack.c.l.b16 %v1715
    %v1851 = vunpack.c.l.b16 %v1716
    %v1852 = vunpack.c.l.b16 %v1717
    %v1853 = vunpack.c.l.b16 %v1718
    %v1854 = vunpack.c.l.b16 %v1719
    %v1855 = vunpack.c.l.b16 %v1720
    %v1856 = vunpack.c.l.b16 %v1721
    %v1857 = vunpack.c.l.b16 %v1722
    %v1858 = vunpack.c.l.b16 %v1723
    %v1859 = vunpack.c.l.b16 %v1724
    %v1860 = vunpack.c.l.b16 %v1725
    %v1861 = vunpack.c.l.b16 %v1726
    %v1862 = vunpack.c.l.b16 %v1727
    %v1863 = vunpack.c.l.b16 %v1728
    %v1864 = vunpack.c.l.b16 %v1729
    %v1865 = vunpack.c.l.b16 %v1730
    %v1866 = vunpack.c.l.b16 %v1731
    %v1867 = vunpack.c.l.b16 %v1732
    %v1868 = vunpack.c.l.b16 %v1733
    %v1869 = vunpack.c.l.b16 %v1734
    %v1870 = vunpack.c.l.b16 %v1735
    %v1871 = vunpack.c.l.b16 %v1736
    %v1872 = vunpack.c.l.b16 %v1737
    %v1873 = vunpack.c.l.b16 %v1738
    %v1874 = vunpack.c.l.b16 %v1739
    %v1875 = vpack.c.b16 %v1812, %v1811
    %v1876 = vpack.c.b16 %v1814, %v1813
    %v1877 = vpack.c.b16 %v1816, %v1815
    %v1878 = vpack.c.b16 %v1818, %v1817
    %v1879 = vpack.c.b16 %v1820, %v1819
    %v1880 = vpack.c.b16 %v1822, %v1821
    %v1881 = vpack.c.b16 %v1824, %v1823
    %v1882 = vpack.c.b16 %v1826, %v1825
    %v1883 = vpack.c.b16 %v1828, %v1827
    %v1884 = vpack.c.b16 %v1830, %v1829
    %v1885 = vpack.c.b16 %v1832, %v1831
    %v1886 = vpack.c.b16 %v1834, %v1833
    %v1887 = vpack.c.b16 %v1836, %v1835
    %v1888 = vpack.c.b16 %v1838, %v1837
    %v1889 = vpack.c.b16 %v1840, %v1839
    %v1890 = vpack.c.b16 %v1842, %v1841
    %v1891 = vpack.c.b16 %v1844, %v1843
    %v1892 = vpack.c.b16 %v1846, %v1845
    %v1893 = vpack.c.b16 %v1848, %v1847
    %v1894 = vpack.c.b16 %v1850, %v1849
    %v1895 = vpack.c.b16 %v1852, %v1851
    %v1896 = vpack.c.b16 %v1854, %v1853
    %v1897 = vpack.c.b16 %v1856, %v1855
    %v1898 = vpack.c.b16 %v1858, %v1857
    %v1899 = vpack.c.b16 %v1860, %v1859
    %v1900 = vpack.c.b16 %v1862, %v1861
    %v1901 = vpack.c.b16 %v1864, %v1863
    %v1902 = vpack.c.b16 %v1866, %v1865
    %v1903 = vpack.c.b16 %v1868, %v1867
    %v1904 = vpack.c.b16 %v1870, %v1869
    %v1905 = vpack.c.b16 %v1872, %v1871
    %v1906 = vpack.c.b16 %v1874, %v1873
    %1939 = vmatprep.subr.bf16.mxu0 0
    %1940 = vmatpush1.bf16.msra.mxu0 %v1875
    %1941 = vmatprep.subr.bf16.mxu0 0
    %1942 = vmatpush1.bf16.msra.mxu0 %v1876
    %1943 = vmatprep.subr.bf16.mxu0 0
    %1944 = vmatpush1.bf16.msra.mxu0 %v1877
    %1945 = vmatprep.subr.bf16.mxu0 0
    %1946 = vmatpush1.bf16.msra.mxu0 %v1878
    %1947 = vmatprep.subr.bf16.mxu0 0
    %1948 = vmatpush1.bf16.msra.mxu0 %v1879
    %1949 = vmatprep.subr.bf16.mxu0 0
    %1950 = vmatpush1.bf16.msra.mxu0 %v1880
    %1951 = vmatprep.subr.bf16.mxu0 0
    %1952 = vmatpush1.bf16.msra.mxu0 %v1881
    %1953 = vmatprep.subr.bf16.mxu0 0
    %1954 = vmatpush1.bf16.msra.mxu0 %v1882
    %1955 = vmatprep.subr.bf16.mxu0 0
    %1956 = vmatpush1.bf16.msra.mxu0 %v1883
    %1957 = vmatprep.subr.bf16.mxu0 0
    %1958 = vmatpush1.bf16.msra.mxu0 %v1884
    %1959 = vmatprep.subr.bf16.mxu0 0
    %1960 = vmatpush1.bf16.msra.mxu0 %v1885
    %1961 = vmatprep.subr.bf16.mxu0 0
    %1962 = vmatpush1.bf16.msra.mxu0 %v1886
    %1963 = vmatprep.subr.bf16.mxu0 0
    %1964 = vmatpush1.bf16.msra.mxu0 %v1887
    %1965 = vmatprep.subr.bf16.mxu0 0
    %1966 = vmatpush1.bf16.msra.mxu0 %v1888
    %1967 = vmatprep.subr.bf16.mxu0 0
    %1968 = vmatpush1.bf16.msra.mxu0 %v1889
    %1969 = vmatprep.subr.bf16.mxu0 0
    %1970 = vmatpush1.bf16.msra.mxu0 %v1890
    %1971 = vmatprep.mubr.bf16.mxu0 %v1673
    %1972 = vmatmul.mubr.bf16.gmra.mrb[0].mxu0 %v1672
    %v1973 = vpop.f32.mrb[0].mxu0
    %v1974 = vadd.f32 %v1745, %v1973
    %v1975 = vpop.f32.mrb[0].mxu0
    %v1976 = vpop.f32.mrb[0].mxu0
    %v1977 = vpop.f32.mrb[0].mxu0
    %1978 = vdwg.mxu0
    %1979 = vmatprep.subr.bf16.mxu0 0
    %1980 = vmatpush1.bf16.msra.mxu0 %v1891
    %1981 = vmatprep.subr.bf16.mxu0 0
    %1982 = vmatpush1.bf16.msra.mxu0 %v1892
    %1983 = vmatprep.subr.bf16.mxu0 0
    %1984 = vmatpush1.bf16.msra.mxu0 %v1893
    %1985 = vmatprep.subr.bf16.mxu0 0
    %1986 = vmatpush1.bf16.msra.mxu0 %v1894
    %1987 = vmatprep.subr.bf16.mxu0 0
    %1988 = vmatpush1.bf16.msra.mxu0 %v1895
    %1989 = vmatprep.subr.bf16.mxu0 0
    %1990 = vmatpush1.bf16.msra.mxu0 %v1896
    %1991 = vmatprep.subr.bf16.mxu0 0
    %1992 = vmatpush1.bf16.msra.mxu0 %v1897
    %1993 = vmatprep.subr.bf16.mxu0 0
    %1994 = vmatpush1.bf16.msra.mxu0 %v1898
    %1995 = vmatprep.subr.bf16.mxu0 0
    %1996 = vmatpush1.bf16.msra.mxu0 %v1899
    %1997 = vmatprep.subr.bf16.mxu0 0
    %1998 = vmatpush1.bf16.msra.mxu0 %v1900
    %1999 = vmatprep.subr.bf16.mxu0 0
    %2000 = vmatpush1.bf16.msra.mxu0 %v1901
    %2001 = vmatprep.subr.bf16.mxu0 0
    %2002 = vmatpush1.bf16.msra.mxu0 %v1902
    %2003 = vmatprep.subr.bf16.mxu0 0
    %2004 = vmatpush1.bf16.msra.mxu0 %v1903
    %2005 = vmatprep.subr.bf16.mxu0 0
    %2006 = vmatpush1.bf16.msra.mxu0 %v1904
    %2007 = vmatprep.subr.bf16.mxu0 0
    %2008 = vmatpush1.bf16.msra.mxu0 %v1905
    %2009 = vmatprep.subr.bf16.mxu0 0
    %2010 = vmatpush1.bf16.msra.mxu0 %v1906
    %2011 = vmatprep.mubr.bf16.mxu0 %v1675
    %2012 = vmatmul.mubr.bf16.gmra.mrb[0].mxu0 %v1674
    %v2013 = vpop.f32.mrb[0].mxu0
    %v2014 = vadd.f32 %v1974, %v2013
    %v2015 = vpop.f32.mrb[0].mxu0
    %v2016 = vpop.f32.mrb[0].mxu0
    %v2017 = vpop.f32.mrb[0].mxu0
    %2018 = vdwg.mxu0
    %2019 = vst [vmem:[#allocation15] sm:$0xff] %v2014
    // Predicated region
    $region82: #{tpu_custom_call.1} parent=1 // pred_check
      _
    $region83: #{tpu_custom_call.1} parent=1 // pred_check_branch
      %2021 = sbr.rel (0) target = $region85
    $region84: #{tpu_custom_call.1} parent=1 // pred_region
      %s2023 = ssub.s32 128, 128
      %2024 = vsyncadd [#allocation4], %s2023
      %s2026 = sshll.u32 [#allocation14], 4
      %s2027 = int_to_ptr.vmem [resolvable:$true] %s2026
      %2029 = dma.vmem_to_hbm [thread:$0]  %s2027, 128, %s13, [#allocation4]
    $region85: #{tpu_custom_call.1} parent=1 // pred_fallthru
      _
    // Predicated region
    $region86: #{tpu_custom_call.1} parent=1 // pred_check
      _
    $region87: #{tpu_custom_call.1} parent=1 // pred_check_branch
      %2031 = sbr.rel (0) target = $region89
    $region88: #{tpu_custom_call.1} parent=1 // pred_region
      %s2033 = ssub.s32 128, 128
      %2034 = vsyncadd [#allocation16], %s2033
      %s2036 = sshll.u32 [#allocation15], 4
      %s2037 = int_to_ptr.vmem [resolvable:$true] %s2036
      %2039 = dma.vmem_to_hbm [thread:$0]  %s2037, 128, %s14, [#allocation16]
    $region89: #{tpu_custom_call.1} parent=1 // pred_fallthru
      _
    // Predicated region
    $region90: #{tpu_custom_call.1} parent=1 // pred_check
      _
    $region91: #{tpu_custom_call.1} parent=1 // pred_check_branch
      %2041 = sbr.rel (0) target = $region93
    $region92: #{tpu_custom_call.1} parent=1 // pred_region
      %2042 = dma.done [#allocation4], 128
    $region93: #{tpu_custom_call.1} parent=1 // pred_fallthru
      _
    // Predicated region
    $region94: #{tpu_custom_call.1} parent=1 // pred_check
      _
    $region95: #{tpu_custom_call.1} parent=1 // pred_check_branch
      %2044 = sbr.rel (0) target = $region97
    $region96: #{tpu_custom_call.1} parent=1 // pred_region
      %2045 = dma.done [#allocation16], 128
    $region97: #{tpu_custom_call.1} parent=1 // pred_fallthru
      _
    %2046 = vsyncpa [#allocation3], 1
    %2047 = vsyncpa [#allocation6], 1
    %2048 = vsyncpa [#allocation9], 1
    %2049 = vsyncpa [#allocation12], 1
    %2050 = vsyncpa [#allocation4], 1
    %2051 = vsyncpa [#allocation16], 1

</llo_original>
